<compile_context>
chip_gen: v5e
topology: v5e:2x2
jax: 0.10.0
libtpu: 0.0.40
codegen_flags: <defaults>
</compile_context>

<pallas_src>
import functools

import numpy as np
import jax
import jax.numpy as jnp
from jax.experimental import pallas as pl
from jax.experimental.pallas import tpu as pltpu

D_MODEL = 32
NHEAD = 2
DFF = 2048          # nn.TransformerEncoderLayer default dim_feedforward
LN_EPS = 1e-5
MAX_LEN = 128


def transformer_encoder_kernel(
    x_full_ref, x_last_ref, pe_tiled_ref, pe_last_ref,
    we_ref, be_ref, wq_ref, bq_ref, wkv_ref, bkv_ref, wo_ref, bo_ref,
    g1_ref, bt1_ref, w1_ref, b1_ref, w2_ref, b2_ref, g2_ref, bt2_ref,
    wf_ref, bf_ref, out_ref, kv_ref, y_ref,
    *, seq_len, nhead, q_chunk, bf16_epilogue,
):
    bt = x_last_ref.shape[0]          # block_b batch rows in this tile
    d = we_ref.shape[1]
    hd = d // nhead
    n_chunks = bt // q_chunk
    ck = q_chunk * seq_len            # kv rows per query chunk

    we = we_ref[...]
    be = be_ref[...]

    # ---- embedding (Linear(1, d_model)) + positional encoding -------------
    emb_all = x_full_ref[...] * we + be + pe_tiled_ref[...]    # (Bt*S, D)
    emb_last = x_last_ref[...] * we + be + pe_last_ref[...]    # (Bt, D)

    # ---- fused K|V projection for ALL tokens -> VMEM scratch ---------------
    kv_ref[...] = (
        jnp.dot(emb_all, wkv_ref[...], preferred_element_type=jnp.float32)
        + bkv_ref[...]
    )

    # ---- Q (pre-scaled by 1/sqrt(hd) in the wrapper), last tokens only -----
    q = jnp.dot(emb_last, wq_ref[...], preferred_element_type=jnp.float32) + bq_ref[...]

    # ---- block-diagonal mask, built ONCE (identical for every chunk) -------
    # local query row r attends local kv rows [r*S, (r+1)*S)
    col = jax.lax.broadcasted_iota(jnp.int32, (q_chunk, ck), 1)
    row = jax.lax.broadcasted_iota(jnp.int32, (q_chunk, ck), 0)
    valid = (col >= row * seq_len) & (col < (row + 1) * seq_len)

    wo = wo_ref[...]
    bo = bo_ref[...]

    # ---- chunked multi-head attention: small (q_chunk, q_chunk*S) tiles ----
    for c in range(n_chunks):                  # static unroll (<= 16 chunks)
        r0 = c * q_chunk
        q_c = q[r0:r0 + q_chunk, :]                             # (Bq, D)
        kv_c = kv_ref[pl.ds(c * ck, ck), :]                     # (Bq*S, 2D)

        attn_c = bo                                             # (1, D) -> bcast
        for h in range(nhead):                                  # nhead = 2
            qh = q_c[:, h * hd:(h + 1) * hd]                    # (Bq, hd)
            kh = kv_c[:, h * hd:(h + 1) * hd]                   # (Bq*S, hd)
            vh = kv_c[:, d + h * hd:d + (h + 1) * hd]           # (Bq*S, hd)
            s = jax.lax.dot_general(                            # (Bq, Bq*S)
                qh, kh, (((1,), (1,)), ((), ())),
                preferred_element_type=jnp.float32)
            s = jnp.where(valid, s, -1e30)
            m = jnp.max(s, axis=-1, keepdims=True)
            p = jnp.exp(s - m)
            denom = jnp.sum(p, axis=-1, keepdims=True)
            p = p * pl.reciprocal(denom, approx=True)
            ctx_h = jnp.dot(p, vh, preferred_element_type=jnp.float32)  # (Bq, hd)
            # fold head h directly through its rows of W_o (no lane concat)
            attn_c = attn_c + jnp.dot(ctx_h, wo[h * hd:(h + 1) * hd, :],
                                      preferred_element_type=jnp.float32)

        # residual input for this chunk -> scratch
        y_ref[pl.ds(r0, q_chunk), :] = emb_last[r0:r0 + q_chunk, :] + attn_c

    # ---- LayerNorm1 (post-norm) over the full batch tile -------------------
    y = y_ref[...]                                              # (Bt, D)
    mu = jnp.mean(y, axis=-1, keepdims=True)
    var = jnp.mean((y - mu) ** 2, axis=-1, keepdims=True)
    y = (y - mu) * jax.lax.rsqrt(var + LN_EPS) * g1_ref[...] + bt1_ref[...]

    # ---- feed-forward (ReLU), bf16 weights, f32 MXU accumulation -----------
    h1 = jnp.dot(y.astype(jnp.bfloat16), w1_ref[...],
                 preferred_element_type=jnp.float32)
    if bf16_epilogue:
        # bias + ReLU + cast done once in packed bf16 (v6e/v7x bf16 VPU)
        h1 = jnp.maximum(h1.astype(jnp.bfloat16) + b1_ref[...], 0)
    else:
        # v5e path: keep the elementwise epilogue in f32 (no bf16 VPU)
        h1 = jnp.maximum(h1 + b1_ref[...], 0.0).astype(jnp.bfloat16)
    h2 = jnp.dot(h1, w2_ref[...], preferred_element_type=jnp.float32) + b2_ref[...]

    # ---- residual + LayerNorm2 ---------------------------------------------
    z = y + h2
    mu2 = jnp.mean(z, axis=-1, keepdims=True)
    var2 = jnp.mean((z - mu2) ** 2, axis=-1, keepdims=True)
    z = (z - mu2) * jax.lax.rsqrt(var2 + LN_EPS) * g2_ref[...] + bt2_ref[...]

    # ---- final Linear(d_model, 1); lane-dense (1, Bt) output row -----------
    out_row = jax.lax.dot_general(              # wf @ z^T -> (1, Bt)
        wf_ref[...], z, (((1,), (1,)), ((), ())),
        preferred_element_type=jnp.float32) + bf_ref[...]
    out_ref[0] = out_row


def _round_up(x, m):
    return ((x + m - 1) // m) * m


def _choose_block_b(B, S):
    # Attention is chunked in-kernel, so block_b is limited only by the VMEM
    # footprint of the kv scratch + FFN intermediates. Conservative 8 MiB cap
    # keeps total usage well inside v7x's 32 MiB / v5e's 16 MiB scoped limits.
    bt = 512
    while bt > 32 and (bt * S * 2 * D_MODEL + bt * DFF) * 4 > (8 << 20):
        bt //= 2
    if B <= 8:
        return 8
    if B <= 32:
        return _round_up(B, 8)          # single small tile; q_chunk == block_b
    # >= 2 grid tiles so dimension_semantics=("parallel",) can shard across
    # v7x's two TensorCores; multiple of 32 so q_chunk=32 divides block_b.
    half = _round_up((B + 1) // 2, 32)
    return max(32, min(bt, half))


def _bf16_vpu_available():
    try:
        kind = jax.devices()[0].device_kind.lower()
    except Exception:
        return False
    return not any(t in kind for t in ("v2", "v3", "v4", "v5"))


def init_params(key, d_model=D_MODEL, dff=DFF, max_len=MAX_LEN):
    keys = jax.random.split(key, 12)

    def w(k, shape, scale=0.05):
        return (scale * jax.random.normal(k, shape)).astype(jnp.float32)

    # positional encoding buffer (same formula as PositionalEncoding)
    position = jnp.arange(max_len, dtype=jnp.float32)[:, None]
    div_term = jnp.exp(
        jnp.arange(0, d_model, 2, dtype=jnp.float32) * (-np.log(10000.0) / d_model)
    )
    ang = position * div_term
    pe = jnp.zeros((max_len, d_model), jnp.float32)
    pe = pe.at[:, 0::2].set(jnp.sin(ang))
    pe = pe.at[:, 1::2].set(jnp.cos(ang))

    return dict(
        pe=pe,
        we=w(keys[0], (1, d_model)),                       # embed.weight^T
        be=w(keys[1], (1, d_model)),                       # embed.bias
        wq=w(keys[2], (d_model, d_model)),                 # in_proj (q)^T
        bq=w(keys[3], (1, d_model)),
        wk=w(keys[4], (d_model, d_model)),                 # in_proj (k)^T
        bk=w(keys[5], (1, d_model)),
        wv=w(keys[6], (d_model, d_model)),                 # in_proj (v)^T
        bv=w(keys[7], (1, d_model)),
        wo=w(keys[8], (d_model, d_model)),                 # out_proj.weight^T
        bo=jnp.zeros((1, d_model), jnp.float32),
        g1=jnp.ones((1, d_model), jnp.float32),
        bt1=jnp.zeros((1, d_model), jnp.float32),
        w1=w(keys[9], (d_model, dff)).astype(jnp.bfloat16),    # linear1.weight^T
        b1=jnp.zeros((1, dff), jnp.float32),
        w2=w(keys[10], (dff, d_model)).astype(jnp.bfloat16),   # linear2.weight^T
        b2=jnp.zeros((1, d_model), jnp.float32),
        g2=jnp.ones((1, d_model), jnp.float32),
        bt2=jnp.zeros((1, d_model), jnp.float32),
        wf=w(keys[11], (1, d_model)),                      # fc.weight (row)
        bf=jnp.zeros((1, 1), jnp.float32),                 # fc.bias
    )


def transformer_encoder_forward(x, params, block_b=None):
    B, S = x.shape
    assert S <= params["pe"].shape[0], "sequence longer than PE buffer"
    d = D_MODEL

    if block_b is None:
        block_b = _choose_block_b(B, S)
    q_chunk = 32 if block_b % 32 == 0 else block_b
    assert block_b % q_chunk == 0

    num_tiles = pl.cdiv(B, block_b)
    b_pad = num_tiles * block_b

    x = x.astype(jnp.float32)
    if b_pad != B:
        x = jnp.pad(x, ((0, b_pad - B), (0, 0)))

    x_full = x.reshape(b_pad * S, 1)          # batch-major flat tokens
    x_last = x[:, S - 1:S]                    # (B_pad, 1) last-token feature

    pe = params["pe"][:S]                     # (S, D)
    pe_tiled = jnp.tile(pe, (block_b, 1))     # (Bt*S, D), matches token order
    pe_last = pe[S - 1:S]                     # (1, D)

    scale = float(1.0 / np.sqrt(d // NHEAD))
    wq = params["wq"] * scale                 # fold 1/sqrt(hd) into q projection
    bq = params["bq"] * scale
    wkv = jnp.concatenate([params["wk"], params["wv"]], axis=1)   # (D, 2D)
    bkv = jnp.concatenate([params["bk"], params["bv"]], axis=1)   # (1, 2D)

    bf16_epilogue = _bf16_vpu_available()
    b1 = params["b1"].astype(jnp.bfloat16) if bf16_epilogue else params["b1"]

    args = [
        x_full, x_last, pe_tiled, pe_last,
        params["we"], params["be"], wq, bq, wkv, bkv,
        params["wo"], params["bo"], params["g1"], params["bt1"],
        params["w1"], b1, params["w2"], params["b2"],
        params["g2"], params["bt2"], params["wf"], params["bf"],
    ]

    def const_spec(a):
        nd = a.ndim
        return pl.BlockSpec(a.shape, lambda i, _nd=nd: (0,) * _nd)

    in_specs = [
        pl.BlockSpec((block_b * S, 1), lambda i: (i, 0)),   # x_full batch-tile
        pl.BlockSpec((block_b, 1), lambda i: (i, 0)),       # x_last batch-tile
    ] + [const_spec(a) for a in args[2:]]
    out_spec = pl.BlockSpec((1, 1, block_b), lambda i: (i, 0, 0))

    kernel = functools.partial(
        transformer_encoder_kernel,
        seq_len=S, nhead=NHEAD, q_chunk=q_chunk, bf16_epilogue=bf16_epilogue,
    )

    out = pl.pallas_call(
        kernel,
        out_shape=jax.ShapeDtypeStruct((num_tiles, 1, block_b), jnp.float32),
        grid_spec=pltpu.PrefetchScalarGridSpec(
            num_scalar_prefetch=0,
            grid=(num_tiles,),
            in_specs=in_specs,
            out_specs=out_spec,
            scratch_shapes=[
                pltpu.VMEM((block_b * S, 2 * d), jnp.float32),   # K|V
                pltpu.VMEM((block_b, d), jnp.float32),           # attn residual y
            ],
        ),
        compiler_params=pltpu.CompilerParams(
            dimension_semantics=("parallel",),
            vmem_limit_bytes=32 * 1024 * 1024,
        ),
    )(*args)

    return out.reshape(num_tiles * block_b, 1)[:B]


if __name__ == "__main__":
    key = jax.random.PRNGKey(0)
    k_param, k_x = jax.random.split(key)

    B, S = 2, 8
    params = init_params(k_param)
    x = jax.random.normal(k_x, (B, S), dtype=jnp.float32)

    out = transformer_encoder_forward(x, params)
    out = jax.block_until_ready(out)

    assert out.shape == (B, 1), out.shape
    assert bool(jnp.all(jnp.isfinite(out)))
    print("KERNEL_OK")
</pallas_src>

<mosaic_0001>
module attributes {stable_mosaic.version = 11 : i64} {
  func.func @transformer_encoder_kernel(%arg0: i32, %arg1: memref<64x1xf32, #tpu.memory_space<vmem>>, %arg2: memref<8x1xf32, #tpu.memory_space<vmem>>, %arg3: memref<64x32xf32, #tpu.memory_space<vmem>>, %arg4: memref<1x32xf32, #tpu.memory_space<vmem>>, %arg5: memref<1x32xf32, #tpu.memory_space<vmem>>, %arg6: memref<1x32xf32, #tpu.memory_space<vmem>>, %arg7: memref<32x32xf32, #tpu.memory_space<vmem>>, %arg8: memref<1x32xf32, #tpu.memory_space<vmem>>, %arg9: memref<32x64xf32, #tpu.memory_space<vmem>>, %arg10: memref<1x64xf32, #tpu.memory_space<vmem>>, %arg11: memref<32x32xf32, #tpu.memory_space<vmem>>, %arg12: memref<1x32xf32, #tpu.memory_space<vmem>>, %arg13: memref<1x32xf32, #tpu.memory_space<vmem>>, %arg14: memref<1x32xf32, #tpu.memory_space<vmem>>, %arg15: memref<32x2048xbf16, #tpu.memory_space<vmem>>, %arg16: memref<1x2048xbf16, #tpu.memory_space<vmem>>, %arg17: memref<2048x32xbf16, #tpu.memory_space<vmem>>, %arg18: memref<1x32xf32, #tpu.memory_space<vmem>>, %arg19: memref<1x32xf32, #tpu.memory_space<vmem>>, %arg20: memref<1x32xf32, #tpu.memory_space<vmem>>, %arg21: memref<1x32xf32, #tpu.memory_space<vmem>>, %arg22: memref<1x1xf32, #tpu.memory_space<vmem>>, %arg23: memref<1x1x8xf32, #tpu.memory_space<vmem>>, %arg24: memref<64x64xf32, #tpu.memory_space<vmem>>, %arg25: memref<8x32xf32, #tpu.memory_space<vmem>>) attributes {dimension_semantics = [#tpu.dimension_semantics<parallel>], iteration_bounds = array<i64: 1>, scalar_prefetch = 0 : i64, scratch_operands = 2 : i64, tpu.core_type = #tpu.core_type<tc>, window_params = [{transform_indices = @transform_0, window_bounds = array<i64: 64, 1>}, {transform_indices = @transform_1, window_bounds = array<i64: 8, 1>}, {pipeline_mode = #tpu.pipeline_mode<synchronous>, transform_indices = @transform_2, window_bounds = array<i64: 64, 32>}, {pipeline_mode = #tpu.pipeline_mode<synchronous>, transform_indices = @transform_3, window_bounds = array<i64: 1, 32>}, {pipeline_mode = #tpu.pipeline_mode<synchronous>, transform_indices = @transform_4, window_bounds = array<i64: 1, 32>}, {pipeline_mode = #tpu.pipeline_mode<synchronous>, transform_indices = @transform_5, window_bounds = array<i64: 1, 32>}, {pipeline_mode = #tpu.pipeline_mode<synchronous>, transform_indices = @transform_6, window_bounds = array<i64: 32, 32>}, {pipeline_mode = #tpu.pipeline_mode<synchronous>, transform_indices = @transform_7, window_bounds = array<i64: 1, 32>}, {pipeline_mode = #tpu.pipeline_mode<synchronous>, transform_indices = @transform_8, window_bounds = array<i64: 32, 64>}, {pipeline_mode = #tpu.pipeline_mode<synchronous>, transform_indices = @transform_9, window_bounds = array<i64: 1, 64>}, {pipeline_mode = #tpu.pipeline_mode<synchronous>, transform_indices = @transform_10, window_bounds = array<i64: 32, 32>}, {pipeline_mode = #tpu.pipeline_mode<synchronous>, transform_indices = @transform_11, window_bounds = array<i64: 1, 32>}, {pipeline_mode = #tpu.pipeline_mode<synchronous>, transform_indices = @transform_12, window_bounds = array<i64: 1, 32>}, {pipeline_mode = #tpu.pipeline_mode<synchronous>, transform_indices = @transform_13, window_bounds = array<i64: 1, 32>}, {pipeline_mode = #tpu.pipeline_mode<synchronous>, transform_indices = @transform_14, window_bounds = array<i64: 32, 2048>}, {pipeline_mode = #tpu.pipeline_mode<synchronous>, transform_indices = @transform_15, window_bounds = array<i64: 1, 2048>}, {pipeline_mode = #tpu.pipeline_mode<synchronous>, transform_indices = @transform_16, window_bounds = array<i64: 2048, 32>}, {pipeline_mode = #tpu.pipeline_mode<synchronous>, transform_indices = @transform_17, window_bounds = array<i64: 1, 32>}, {pipeline_mode = #tpu.pipeline_mode<synchronous>, transform_indices = @transform_18, window_bounds = array<i64: 1, 32>}, {pipeline_mode = #tpu.pipeline_mode<synchronous>, transform_indices = @transform_19, window_bounds = array<i64: 1, 32>}, {pipeline_mode = #tpu.pipeline_mode<synchronous>, transform_indices = @transform_20, window_bounds = array<i64: 1, 32>}, {pipeline_mode = #tpu.pipeline_mode<synchronous>, transform_indices = @transform_21, window_bounds = array<i64: 1, 1>}, {transform_indices = @transform_22, window_bounds = array<i64: 1, 1, 8>}]} {
    %c0 = arith.constant 0 : index
    %c0_0 = arith.constant 0 : index
    %0 = vector.load %arg5[%c0, %c0_0] : memref<1x32xf32, #tpu.memory_space<vmem>>, vector<1x32xf32>
    %c0_1 = arith.constant 0 : index
    %c0_2 = arith.constant 0 : index
    %1 = vector.load %arg6[%c0_1, %c0_2] : memref<1x32xf32, #tpu.memory_space<vmem>>, vector<1x32xf32>
    %c0_3 = arith.constant 0 : index
    %c0_4 = arith.constant 0 : index
    %2 = vector.load %arg1[%c0_3, %c0_4] : memref<64x1xf32, #tpu.memory_space<vmem>>, vector<64x1xf32>
    %3 = vector.broadcast %2 : vector<64x1xf32> to vector<64x32xf32>
    %4 = vector.broadcast %0 : vector<1x32xf32> to vector<64x32xf32>
    %5 = arith.mulf %3, %4 : vector<64x32xf32>
    %6 = vector.broadcast %1 : vector<1x32xf32> to vector<64x32xf32>
    %7 = arith.addf %5, %6 : vector<64x32xf32>
    %c0_5 = arith.constant 0 : index
    %c0_6 = arith.constant 0 : index
    %8 = vector.load %arg3[%c0_5, %c0_6] : memref<64x32xf32, #tpu.memory_space<vmem>>, vector<64x32xf32>
    %9 = arith.addf %7, %8 : vector<64x32xf32>
    %c0_7 = arith.constant 0 : index
    %c0_8 = arith.constant 0 : index
    %10 = vector.load %arg2[%c0_7, %c0_8] : memref<8x1xf32, #tpu.memory_space<vmem>>, vector<8x1xf32>
    %11 = vector.broadcast %10 : vector<8x1xf32> to vector<8x32xf32>
    %12 = vector.broadcast %0 : vector<1x32xf32> to vector<8x32xf32>
    %13 = arith.mulf %11, %12 : vector<8x32xf32>
    %14 = vector.broadcast %1 : vector<1x32xf32> to vector<8x32xf32>
    %15 = arith.addf %13, %14 : vector<8x32xf32>
    %c0_9 = arith.constant 0 : index
    %c0_10 = arith.constant 0 : index
    %16 = vector.load %arg4[%c0_9, %c0_10] : memref<1x32xf32, #tpu.memory_space<vmem>>, vector<1x32xf32>
    %17 = vector.broadcast %16 : vector<1x32xf32> to vector<8x32xf32>
    %18 = arith.addf %15, %17 : vector<8x32xf32>
    %c0_11 = arith.constant 0 : index
    %c0_12 = arith.constant 0 : index
    %19 = vector.load %arg9[%c0_11, %c0_12] : memref<32x64xf32, #tpu.memory_space<vmem>>, vector<32x64xf32>
    %cst = arith.constant dense<0.000000e+00> : vector<64x64xf32>
    %20 = tpu.matmul %9, %19, %cst {dimension_numbers = #tpu.dot_dimension_numbers<[1], [0], [0], [1], [0, 0, 1, 1], [], []>} : vector<64x32xf32>, vector<32x64xf32>, vector<64x64xf32> -> vector<64x64xf32>
    %c0_13 = arith.constant 0 : index
    %c0_14 = arith.constant 0 : index
    %21 = vector.load %arg10[%c0_13, %c0_14] : memref<1x64xf32, #tpu.memory_space<vmem>>, vector<1x64xf32>
    %22 = vector.broadcast %21 : vector<1x64xf32> to vector<64x64xf32>
    %23 = arith.addf %20, %22 : vector<64x64xf32>
    %c0_15 = arith.constant 0 : index
    %c0_16 = arith.constant 0 : index
    %24 = vector.load %arg24[%c0_15, %c0_16] : memref<64x64xf32, #tpu.memory_space<vmem>>, vector<64x64xf32>
    tpu.vector_store %arg24[%c0_15, %c0_16], %23 {strides = array<i32>} : memref<64x64xf32, #tpu.memory_space<vmem>>, vector<64x64xf32>,
    %c0_17 = arith.constant 0 : index
    %c0_18 = arith.constant 0 : index
    %25 = vector.load %arg7[%c0_17, %c0_18] : memref<32x32xf32, #tpu.memory_space<vmem>>, vector<32x32xf32>
    %cst_19 = arith.constant dense<0.000000e+00> : vector<8x32xf32>
    %26 = tpu.matmul %18, %25, %cst_19 {dimension_numbers = #tpu.dot_dimension_numbers<[1], [0], [0], [1], [0, 0, 1, 1], [], []>} : vector<8x32xf32>, vector<32x32xf32>, vector<8x32xf32> -> vector<8x32xf32>
    %c0_20 = arith.constant 0 : index
    %c0_21 = arith.constant 0 : index
    %27 = vector.load %arg8[%c0_20, %c0_21] : memref<1x32xf32, #tpu.memory_space<vmem>>, vector<1x32xf32>
    %28 = vector.broadcast %27 : vector<1x32xf32> to vector<8x32xf32>
    %29 = arith.addf %26, %28 : vector<8x32xf32>
    %30 = tpu.iota {dimensions = array<i32: 1>} : vector<8x64xi32>
    %31 = tpu.iota {dimensions = array<i32: 0>} : vector<8x64xi32>
    %c8_i32 = arith.constant 8 : i32
    %32 = vector.broadcast %c8_i32 : i32 to vector<8x64xi32>
    %33 = arith.muli %31, %32 : vector<8x64xi32>
    %34 = arith.cmpi sge, %30, %33 : vector<8x64xi32>
    %c1_i32 = arith.constant 1 : i32
    %35 = vector.broadcast %c1_i32 : i32 to vector<8x64xi32>
    %36 = arith.addi %31, %35 : vector<8x64xi32>
    %c8_i32_22 = arith.constant 8 : i32
    %37 = vector.broadcast %c8_i32_22 : i32 to vector<8x64xi32>
    %38 = arith.muli %36, %37 : vector<8x64xi32>
    %39 = arith.cmpi slt, %30, %38 : vector<8x64xi32>
    %40 = arith.andi %34, %39 : vector<8x64xi1>
    %c0_23 = arith.constant 0 : index
    %c0_24 = arith.constant 0 : index
    %41 = vector.load %arg11[%c0_23, %c0_24] : memref<32x32xf32, #tpu.memory_space<vmem>>, vector<32x32xf32>
    %c0_25 = arith.constant 0 : index
    %c0_26 = arith.constant 0 : index
    %42 = vector.load %arg12[%c0_25, %c0_26] : memref<1x32xf32, #tpu.memory_space<vmem>>, vector<1x32xf32>
    %c0_27 = arith.constant 0 : index
    %c0_28 = arith.constant 0 : index
    %43 = vector.load %arg24[%c0_27, %c0_28] : memref<64x64xf32, #tpu.memory_space<vmem>>, vector<64x64xf32>
    %44 = vector.extract_strided_slice %29 {offsets = [0, 0], sizes = [8, 16], strides = [1, 1]} : vector<8x32xf32> to vector<8x16xf32>
    %45 = vector.extract_strided_slice %43 {offsets = [0, 0], sizes = [64, 16], strides = [1, 1]} : vector<64x64xf32> to vector<64x16xf32>
    %46 = vector.extract_strided_slice %43 {offsets = [0, 32], sizes = [64, 16], strides = [1, 1]} : vector<64x64xf32> to vector<64x16xf32>
    %cst_29 = arith.constant dense<0.000000e+00> : vector<8x64xf32>
    %47 = tpu.matmul %44, %45, %cst_29 {dimension_numbers = #tpu.dot_dimension_numbers<[1], [1], [0], [0], [0, 0, 1, 0], [], []>} : vector<8x16xf32>, vector<64x16xf32>, vector<8x64xf32> -> vector<8x64xf32>
    %cst_30 = arith.constant -1.000000e+30 : f32
    %48 = vector.broadcast %cst_30 : f32 to vector<8x64xf32>
    %49 = arith.select %40, %47, %48 : vector<8x64xi1>, vector<8x64xf32>
    %cst_31 = arith.constant dense<0xFF800000> : vector<8xf32>
    %50 = vector.multi_reduction <maximumf>, %49, %cst_31 [1] : vector<8x64xf32> to vector<8xf32>
    %51 = vector.shape_cast %50 : vector<8xf32> to vector<8x1xf32>
    %52 = vector.broadcast %51 : vector<8x1xf32> to vector<8x64xf32>
    %53 = arith.subf %49, %52 : vector<8x64xf32>
    %54 = math.exp %53 : vector<8x64xf32>
    %cst_32 = arith.constant dense<0.000000e+00> : vector<8xf32>
    %55 = vector.multi_reduction <add>, %54, %cst_32 [1] : vector<8x64xf32> to vector<8xf32>
    %56 = vector.shape_cast %55 : vector<8xf32> to vector<8x1xf32>
    %57 = tpu.reciprocal %56 {approx = true} : vector<8x1xf32> -> vector<8x1xf32>
    %58 = vector.broadcast %57 : vector<8x1xf32> to vector<8x64xf32>
    %59 = arith.mulf %54, %58 : vector<8x64xf32>
    %cst_33 = arith.constant dense<0.000000e+00> : vector<8x16xf32>
    %60 = tpu.matmul %59, %46, %cst_33 {dimension_numbers = #tpu.dot_dimension_numbers<[1], [0], [0], [1], [0, 0, 1, 1], [], []>} : vector<8x64xf32>, vector<64x16xf32>, vector<8x16xf32> -> vector<8x16xf32>
    %61 = vector.extract_strided_slice %41 {offsets = [0, 0], sizes = [16, 32], strides = [1, 1]} : vector<32x32xf32> to vector<16x32xf32>
    %cst_34 = arith.constant dense<0.000000e+00> : vector<8x32xf32>
    %62 = tpu.matmul %60, %61, %cst_34 {dimension_numbers = #tpu.dot_dimension_numbers<[1], [0], [0], [1], [0, 0, 1, 1], [], []>} : vector<8x16xf32>, vector<16x32xf32>, vector<8x32xf32> -> vector<8x32xf32>
    %63 = vector.broadcast %42 : vector<1x32xf32> to vector<8x32xf32>
    %64 = arith.addf %63, %62 : vector<8x32xf32>
    %65 = vector.extract_strided_slice %29 {offsets = [0, 16], sizes = [8, 16], strides = [1, 1]} : vector<8x32xf32> to vector<8x16xf32>
    %66 = vector.extract_strided_slice %43 {offsets = [0, 16], sizes = [64, 16], strides = [1, 1]} : vector<64x64xf32> to vector<64x16xf32>
    %67 = vector.extract_strided_slice %43 {offsets = [0, 48], sizes = [64, 16], strides = [1, 1]} : vector<64x64xf32> to vector<64x16xf32>
    %cst_35 = arith.constant dense<0.000000e+00> : vector<8x64xf32>
    %68 = tpu.matmul %65, %66, %cst_35 {dimension_numbers = #tpu.dot_dimension_numbers<[1], [1], [0], [0], [0, 0, 1, 0], [], []>} : vector<8x16xf32>, vector<64x16xf32>, vector<8x64xf32> -> vector<8x64xf32>
    %cst_36 = arith.constant -1.000000e+30 : f32
    %69 = vector.broadcast %cst_36 : f32 to vector<8x64xf32>
    %70 = arith.select %40, %68, %69 : vector<8x64xi1>, vector<8x64xf32>
    %cst_37 = arith.constant dense<0xFF800000> : vector<8xf32>
    %71 = vector.multi_reduction <maximumf>, %70, %cst_37 [1] : vector<8x64xf32> to vector<8xf32>
    %72 = vector.shape_cast %71 : vector<8xf32> to vector<8x1xf32>
    %73 = vector.broadcast %72 : vector<8x1xf32> to vector<8x64xf32>
    %74 = arith.subf %70, %73 : vector<8x64xf32>
    %75 = math.exp %74 : vector<8x64xf32>
    %cst_38 = arith.constant dense<0.000000e+00> : vector<8xf32>
    %76 = vector.multi_reduction <add>, %75, %cst_38 [1] : vector<8x64xf32> to vector<8xf32>
    %77 = vector.shape_cast %76 : vector<8xf32> to vector<8x1xf32>
    %78 = tpu.reciprocal %77 {approx = true} : vector<8x1xf32> -> vector<8x1xf32>
    %79 = vector.broadcast %78 : vector<8x1xf32> to vector<8x64xf32>
    %80 = arith.mulf %75, %79 : vector<8x64xf32>
    %cst_39 = arith.constant dense<0.000000e+00> : vector<8x16xf32>
    %81 = tpu.matmul %80, %67, %cst_39 {dimension_numbers = #tpu.dot_dimension_numbers<[1], [0], [0], [1], [0, 0, 1, 1], [], []>} : vector<8x64xf32>, vector<64x16xf32>, vector<8x16xf32> -> vector<8x16xf32>
    %82 = vector.extract_strided_slice %41 {offsets = [16, 0], sizes = [16, 32], strides = [1, 1]} : vector<32x32xf32> to vector<16x32xf32>
    %cst_40 = arith.constant dense<0.000000e+00> : vector<8x32xf32>
    %83 = tpu.matmul %81, %82, %cst_40 {dimension_numbers = #tpu.dot_dimension_numbers<[1], [0], [0], [1], [0, 0, 1, 1], [], []>} : vector<8x16xf32>, vector<16x32xf32>, vector<8x32xf32> -> vector<8x32xf32>
    %84 = arith.addf %64, %83 : vector<8x32xf32>
    %85 = arith.addf %18, %84 : vector<8x32xf32>
    %c0_41 = arith.constant 0 : index
    %c0_42 = arith.constant 0 : index
    %86 = vector.load %arg25[%c0_41, %c0_42] : memref<8x32xf32, #tpu.memory_space<vmem>>, vector<8x32xf32>
    tpu.vector_store %arg25[%c0_41, %c0_42], %85 {strides = array<i32>} : memref<8x32xf32, #tpu.memory_space<vmem>>, vector<8x32xf32>,
    %c0_43 = arith.constant 0 : index
    %c0_44 = arith.constant 0 : index
    %87 = vector.load %arg25[%c0_43, %c0_44] : memref<8x32xf32, #tpu.memory_space<vmem>>, vector<8x32xf32>
    %cst_45 = arith.constant dense<0.000000e+00> : vector<8xf32>
    %88 = vector.multi_reduction <add>, %87, %cst_45 [1] : vector<8x32xf32> to vector<8xf32>
    %89 = vector.shape_cast %88 : vector<8xf32> to vector<8x1xf32>
    %cst_46 = arith.constant 3.200000e+01 : f32
    %90 = vector.broadcast %cst_46 : f32 to vector<8x1xf32>
    %91 = arith.divf %89, %90 : vector<8x1xf32>
    %92 = vector.broadcast %91 : vector<8x1xf32> to vector<8x32xf32>
    %93 = arith.subf %87, %92 : vector<8x32xf32>
    %94 = arith.mulf %93, %93 : vector<8x32xf32>
    %cst_47 = arith.constant dense<0.000000e+00> : vector<8xf32>
    %95 = vector.multi_reduction <add>, %94, %cst_47 [1] : vector<8x32xf32> to vector<8xf32>
    %96 = vector.shape_cast %95 : vector<8xf32> to vector<8x1xf32>
    %cst_48 = arith.constant 3.200000e+01 : f32
    %97 = vector.broadcast %cst_48 : f32 to vector<8x1xf32>
    %98 = arith.divf %96, %97 : vector<8x1xf32>
    %99 = vector.broadcast %91 : vector<8x1xf32> to vector<8x32xf32>
    %100 = arith.subf %87, %99 : vector<8x32xf32>
    %cst_49 = arith.constant 9.99999974E-6 : f32
    %101 = vector.broadcast %cst_49 : f32 to vector<8x1xf32>
    %102 = arith.addf %98, %101 : vector<8x1xf32>
    %103 = math.rsqrt %102 : vector<8x1xf32>
    %104 = vector.broadcast %103 : vector<8x1xf32> to vector<8x32xf32>
    %105 = arith.mulf %100, %104 : vector<8x32xf32>
    %c0_50 = arith.constant 0 : index
    %c0_51 = arith.constant 0 : index
    %106 = vector.load %arg13[%c0_50, %c0_51] : memref<1x32xf32, #tpu.memory_space<vmem>>, vector<1x32xf32>
    %107 = vector.broadcast %106 : vector<1x32xf32> to vector<8x32xf32>
    %108 = arith.mulf %105, %107 : vector<8x32xf32>
    %c0_52 = arith.constant 0 : index
    %c0_53 = arith.constant 0 : index
    %109 = vector.load %arg14[%c0_52, %c0_53] : memref<1x32xf32, #tpu.memory_space<vmem>>, vector<1x32xf32>
    %110 = vector.broadcast %109 : vector<1x32xf32> to vector<8x32xf32>
    %111 = arith.addf %108, %110 : vector<8x32xf32>
    %112 = arith.truncf %111 : vector<8x32xf32> to vector<8x32xbf16>
    %c0_54 = arith.constant 0 : index
    %c0_55 = arith.constant 0 : index
    %113 = vector.load %arg15[%c0_54, %c0_55] : memref<32x2048xbf16, #tpu.memory_space<vmem>>, vector<32x2048xbf16>
    %cst_56 = arith.constant dense<0.000000e+00> : vector<8x2048xf32>
    %114 = tpu.matmul %112, %113, %cst_56 {dimension_numbers = #tpu.dot_dimension_numbers<[1], [0], [0], [1], [0, 0, 1, 1], [], []>} : vector<8x32xbf16>, vector<32x2048xbf16>, vector<8x2048xf32> -> vector<8x2048xf32>
    %115 = arith.truncf %114 : vector<8x2048xf32> to vector<8x2048xbf16>
    %c0_57 = arith.constant 0 : index
    %c0_58 = arith.constant 0 : index
    %116 = vector.load %arg16[%c0_57, %c0_58] : memref<1x2048xbf16, #tpu.memory_space<vmem>>, vector<1x2048xbf16>
    %117 = vector.broadcast %116 : vector<1x2048xbf16> to vector<8x2048xbf16>
    %118 = arith.addf %115, %117 : vector<8x2048xbf16>
    %cst_59 = arith.constant 0.000000e+00 : bf16
    %119 = vector.broadcast %cst_59 : bf16 to vector<8x2048xbf16>
    %120 = arith.maximumf %118, %119 : vector<8x2048xbf16>
    %c0_60 = arith.constant 0 : index
    %c0_61 = arith.constant 0 : index
    %121 = vector.load %arg17[%c0_60, %c0_61] : memref<2048x32xbf16, #tpu.memory_space<vmem>>, vector<2048x32xbf16>
    %cst_62 = arith.constant dense<0.000000e+00> : vector<8x32xf32>
    %122 = tpu.matmul %120, %121, %cst_62 {dimension_numbers = #tpu.dot_dimension_numbers<[1], [0], [0], [1], [0, 0, 1, 1], [], []>} : vector<8x2048xbf16>, vector<2048x32xbf16>, vector<8x32xf32> -> vector<8x32xf32>
    %c0_63 = arith.constant 0 : index
    %c0_64 = arith.constant 0 : index
    %123 = vector.load %arg18[%c0_63, %c0_64] : memref<1x32xf32, #tpu.memory_space<vmem>>, vector<1x32xf32>
    %124 = vector.broadcast %123 : vector<1x32xf32> to vector<8x32xf32>
    %125 = arith.addf %122, %124 : vector<8x32xf32>
    %126 = arith.addf %111, %125 : vector<8x32xf32>
    %cst_65 = arith.constant dense<0.000000e+00> : vector<8xf32>
    %127 = vector.multi_reduction <add>, %126, %cst_65 [1] : vector<8x32xf32> to vector<8xf32>
    %128 = vector.shape_cast %127 : vector<8xf32> to vector<8x1xf32>
    %cst_66 = arith.constant 3.200000e+01 : f32
    %129 = vector.broadcast %cst_66 : f32 to vector<8x1xf32>
    %130 = arith.divf %128, %129 : vector<8x1xf32>
    %131 = vector.broadcast %130 : vector<8x1xf32> to vector<8x32xf32>
    %132 = arith.subf %126, %131 : vector<8x32xf32>
    %133 = arith.mulf %132, %132 : vector<8x32xf32>
    %cst_67 = arith.constant dense<0.000000e+00> : vector<8xf32>
    %134 = vector.multi_reduction <add>, %133, %cst_67 [1] : vector<8x32xf32> to vector<8xf32>
    %135 = vector.shape_cast %134 : vector<8xf32> to vector<8x1xf32>
    %cst_68 = arith.constant 3.200000e+01 : f32
    %136 = vector.broadcast %cst_68 : f32 to vector<8x1xf32>
    %137 = arith.divf %135, %136 : vector<8x1xf32>
    %138 = vector.broadcast %130 : vector<8x1xf32> to vector<8x32xf32>
    %139 = arith.subf %126, %138 : vector<8x32xf32>
    %cst_69 = arith.constant 9.99999974E-6 : f32
    %140 = vector.broadcast %cst_69 : f32 to vector<8x1xf32>
    %141 = arith.addf %137, %140 : vector<8x1xf32>
    %142 = math.rsqrt %141 : vector<8x1xf32>
    %143 = vector.broadcast %142 : vector<8x1xf32> to vector<8x32xf32>
    %144 = arith.mulf %139, %143 : vector<8x32xf32>
    %c0_70 = arith.constant 0 : index
    %c0_71 = arith.constant 0 : index
    %145 = vector.load %arg19[%c0_70, %c0_71] : memref<1x32xf32, #tpu.memory_space<vmem>>, vector<1x32xf32>
    %146 = vector.broadcast %145 : vector<1x32xf32> to vector<8x32xf32>
    %147 = arith.mulf %144, %146 : vector<8x32xf32>
    %c0_72 = arith.constant 0 : index
    %c0_73 = arith.constant 0 : index
    %148 = vector.load %arg20[%c0_72, %c0_73] : memref<1x32xf32, #tpu.memory_space<vmem>>, vector<1x32xf32>
    %149 = vector.broadcast %148 : vector<1x32xf32> to vector<8x32xf32>
    %150 = arith.addf %147, %149 : vector<8x32xf32>
    %c0_74 = arith.constant 0 : index
    %c0_75 = arith.constant 0 : index
    %151 = vector.load %arg21[%c0_74, %c0_75] : memref<1x32xf32, #tpu.memory_space<vmem>>, vector<1x32xf32>
    %cst_76 = arith.constant dense<0.000000e+00> : vector<1x8xf32>
    %152 = tpu.matmul %151, %150, %cst_76 {dimension_numbers = #tpu.dot_dimension_numbers<[1], [1], [0], [0], [0, 0, 1, 0], [], []>} : vector<1x32xf32>, vector<8x32xf32>, vector<1x8xf32> -> vector<1x8xf32>
    %c0_77 = arith.constant 0 : index
    %c0_78 = arith.constant 0 : index
    %153 = vector.load %arg22[%c0_77, %c0_78] : memref<1x1xf32, #tpu.memory_space<vmem>>, vector<1x1xf32>
    %154 = vector.broadcast %153 : vector<1x1xf32> to vector<1x8xf32>
    %155 = arith.addf %152, %154 : vector<1x8xf32>
    %c0_79 = arith.constant 0 : index
    %c0_80 = arith.constant 0 : index
    %c0_81 = arith.constant 0 : index
    %156 = vector.load %arg23[%c0_79, %c0_80, %c0_81] : memref<1x1x8xf32, #tpu.memory_space<vmem>>, vector<1x1x8xf32>
    %157 = vector.shape_cast %156 : vector<1x1x8xf32> to vector<1x8xf32>
    %158 = vector.shape_cast %155 : vector<1x8xf32> to vector<1x1x8xf32>
    tpu.vector_store %arg23[%c0_79, %c0_80, %c0_81], %158 {strides = array<i32>} : memref<1x1x8xf32, #tpu.memory_space<vmem>>, vector<1x1x8xf32>,
    return
  }
  func.func @transform_0(%arg0: i32) -> (i32, i32) {
    %c0_i32 = arith.constant 0 : i32
    %c0_i32_0 = arith.constant 0 : i32
    return %arg0, %c0_i32 : i32, i32
  }
  func.func @transform_1(%arg0: i32) -> (i32, i32) {
    %c0_i32 = arith.constant 0 : i32
    %c0_i32_0 = arith.constant 0 : i32
    return %arg0, %c0_i32 : i32, i32
  }
  func.func @transform_2(%arg0: i32) -> (i32, i32) {
    %c0_i32 = arith.constant 0 : i32
    %c0_i32_0 = arith.constant 0 : i32
    %c0_i32_1 = arith.constant 0 : i32
    return %c0_i32, %c0_i32_0 : i32, i32
  }
  func.func @transform_3(%arg0: i32) -> (i32, i32) {
    %c0_i32 = arith.constant 0 : i32
    %c0_i32_0 = arith.constant 0 : i32
    %c0_i32_1 = arith.constant 0 : i32
    return %c0_i32, %c0_i32_0 : i32, i32
  }
  func.func @transform_4(%arg0: i32) -> (i32, i32) {
    %c0_i32 = arith.constant 0 : i32
    %c0_i32_0 = arith.constant 0 : i32
    %c0_i32_1 = arith.constant 0 : i32
    return %c0_i32, %c0_i32_0 : i32, i32
  }
  func.func @transform_5(%arg0: i32) -> (i32, i32) {
    %c0_i32 = arith.constant 0 : i32
    %c0_i32_0 = arith.constant 0 : i32
    %c0_i32_1 = arith.constant 0 : i32
    return %c0_i32, %c0_i32_0 : i32, i32
  }
  func.func @transform_6(%arg0: i32) -> (i32, i32) {
    %c0_i32 = arith.constant 0 : i32
    %c0_i32_0 = arith.constant 0 : i32
    %c0_i32_1 = arith.constant 0 : i32
    return %c0_i32, %c0_i32_0 : i32, i32
  }
  func.func @transform_7(%arg0: i32) -> (i32, i32) {
    %c0_i32 = arith.constant 0 : i32
    %c0_i32_0 = arith.constant 0 : i32
    %c0_i32_1 = arith.constant 0 : i32
    return %c0_i32, %c0_i32_0 : i32, i32
  }
  func.func @transform_8(%arg0: i32) -> (i32, i32) {
    %c0_i32 = arith.constant 0 : i32
    %c0_i32_0 = arith.constant 0 : i32
    %c0_i32_1 = arith.constant 0 : i32
    return %c0_i32, %c0_i32_0 : i32, i32
  }
  func.func @transform_9(%arg0: i32) -> (i32, i32) {
    %c0_i32 = arith.constant 0 : i32
    %c0_i32_0 = arith.constant 0 : i32
    %c0_i32_1 = arith.constant 0 : i32
    return %c0_i32, %c0_i32_0 : i32, i32
  }
  func.func @transform_10(%arg0: i32) -> (i32, i32) {
    %c0_i32 = arith.constant 0 : i32
    %c0_i32_0 = arith.constant 0 : i32
    %c0_i32_1 = arith.constant 0 : i32
    return %c0_i32, %c0_i32_0 : i32, i32
  }
  func.func @transform_11(%arg0: i32) -> (i32, i32) {
    %c0_i32 = arith.constant 0 : i32
    %c0_i32_0 = arith.constant 0 : i32
    %c0_i32_1 = arith.constant 0 : i32
    return %c0_i32, %c0_i32_0 : i32, i32
  }
  func.func @transform_12(%arg0: i32) -> (i32, i32) {
    %c0_i32 = arith.constant 0 : i32
    %c0_i32_0 = arith.constant 0 : i32
    %c0_i32_1 = arith.constant 0 : i32
    return %c0_i32, %c0_i32_0 : i32, i32
  }
  func.func @transform_13(%arg0: i32) -> (i32, i32) {
    %c0_i32 = arith.constant 0 : i32
    %c0_i32_0 = arith.constant 0 : i32
    %c0_i32_1 = arith.constant 0 : i32
    return %c0_i32, %c0_i32_0 : i32, i32
  }
  func.func @transform_14(%arg0: i32) -> (i32, i32) {
    %c0_i32 = arith.constant 0 : i32
    %c0_i32_0 = arith.constant 0 : i32
    %c0_i32_1 = arith.constant 0 : i32
    return %c0_i32, %c0_i32_0 : i32, i32
  }
  func.func @transform_15(%arg0: i32) -> (i32, i32) {
    %c0_i32 = arith.constant 0 : i32
    %c0_i32_0 = arith.constant 0 : i32
    %c0_i32_1 = arith.constant 0 : i32
    return %c0_i32, %c0_i32_0 : i32, i32
  }
  func.func @transform_16(%arg0: i32) -> (i32, i32) {
    %c0_i32 = arith.constant 0 : i32
    %c0_i32_0 = arith.constant 0 : i32
    %c0_i32_1 = arith.constant 0 : i32
    return %c0_i32, %c0_i32_0 : i32, i32
  }
  func.func @transform_17(%arg0: i32) -> (i32, i32) {
    %c0_i32 = arith.constant 0 : i32
    %c0_i32_0 = arith.constant 0 : i32
    %c0_i32_1 = arith.constant 0 : i32
    return %c0_i32, %c0_i32_0 : i32, i32
  }
  func.func @transform_18(%arg0: i32) -> (i32, i32) {
    %c0_i32 = arith.constant 0 : i32
    %c0_i32_0 = arith.constant 0 : i32
    %c0_i32_1 = arith.constant 0 : i32
    return %c0_i32, %c0_i32_0 : i32, i32
  }
  func.func @transform_19(%arg0: i32) -> (i32, i32) {
    %c0_i32 = arith.constant 0 : i32
    %c0_i32_0 = arith.constant 0 : i32
    %c0_i32_1 = arith.constant 0 : i32
    return %c0_i32, %c0_i32_0 : i32, i32
  }
  func.func @transform_20(%arg0: i32) -> (i32, i32) {
    %c0_i32 = arith.constant 0 : i32
    %c0_i32_0 = arith.constant 0 : i32
    %c0_i32_1 = arith.constant 0 : i32
    return %c0_i32, %c0_i32_0 : i32, i32
  }
  func.func @transform_21(%arg0: i32) -> (i32, i32) {
    %c0_i32 = arith.constant 0 : i32
    %c0_i32_0 = arith.constant 0 : i32
    %c0_i32_1 = arith.constant 0 : i32
    return %c0_i32, %c0_i32_0 : i32, i32
  }
  func.func @transform_22(%arg0: i32) -> (i32, i32, i32) {
    %c0_i32 = arith.constant 0 : i32
    %c0_i32_0 = arith.constant 0 : i32
    %c0_i32_1 = arith.constant 0 : i32
    return %arg0, %c0_i32, %c0_i32_0 : i32, i32, i32
  }
}

</mosaic_0001>

<llo_original>
// kernel: tpu_custom_call.1
$region0: #{tpu_custom_call.1}
  #allocation0 [shape = 'u32[]', space=smem, size = 0x4, offset = 0x4, fixed_abs, tag = 'smem constant byte address 0x4 - core index']
  #allocation1 [shape = 'u32[72,128]{1,0:T(1,128)}', space=vmem, size = 0x9000, scoped, tag = 'internal scratch']
  #allocation2 [shape = 'f32[64,64]{1,0:T(8,128)}', space=vmem, size = 0x8000, scoped, tag = 'scratch operand']
  #allocation3 [shape = 'f32[8,32]{1,0:T(8,128)}', space=vmem, size = 0x1000, scoped, tag = 'scratch operand']
  #allocation4 [shape = 'f32[1,1]{1,0:T(1,128)S(1)}', space=vmem, size = 0x200, scoped, tag = 'scoped memory for tpu_custom_call.1']
  %s0 = inlined_call_operand.vmem [shape: f32[64,1], index: 0, kind: input, shape index: {}]
  %s1 = inlined_call_operand.vmem [shape: f32[8,1], index: 1, kind: input, shape index: {}]
  %s2 = inlined_call_operand.vmem [shape: f32[64,32], index: 2, kind: input, shape index: {}]
  %s3 = inlined_call_operand.vmem [shape: f32[1,32], index: 3, kind: input, shape index: {}]
  %s4 = inlined_call_operand.vmem [shape: f32[1,32], index: 4, kind: input, shape index: {}]
  %s5 = inlined_call_operand.vmem [shape: f32[1,32], index: 5, kind: input, shape index: {}]
  %s6 = inlined_call_operand.vmem [shape: f32[32,32], index: 6, kind: input, shape index: {}]
  %s7 = inlined_call_operand.vmem [shape: f32[1,32], index: 7, kind: input, shape index: {}]
  %s8 = inlined_call_operand.vmem [shape: f32[32,64], index: 8, kind: input, shape index: {}]
  %s9 = inlined_call_operand.vmem [shape: f32[1,64], index: 9, kind: input, shape index: {}]
  %s10 = inlined_call_operand.vmem [shape: f32[32,32], index: 10, kind: input, shape index: {}]
  %s11 = inlined_call_operand.vmem [shape: f32[1,32], index: 11, kind: input, shape index: {}]
  %s12 = inlined_call_operand.vmem [shape: f32[1,32], index: 12, kind: input, shape index: {}]
  %s13 = inlined_call_operand.vmem [shape: f32[1,32], index: 13, kind: input, shape index: {}]
  %s14 = inlined_call_operand.vmem [shape: bf16[32,2048], index: 14, kind: input, shape index: {}]
  %s15 = inlined_call_operand.vmem [shape: bf16[1,2048], index: 15, kind: input, shape index: {}]
  %s16 = inlined_call_operand.vmem [shape: bf16[2048,32], index: 16, kind: input, shape index: {}]
  %s17 = inlined_call_operand.vmem [shape: f32[1,32], index: 17, kind: input, shape index: {}]
  %s18 = inlined_call_operand.vmem [shape: f32[1,32], index: 18, kind: input, shape index: {}]
  %s19 = inlined_call_operand.vmem [shape: f32[1,32], index: 19, kind: input, shape index: {}]
  %s20 = inlined_call_operand.vmem [shape: f32[1,32], index: 20, kind: input, shape index: {}]
  %s21 = inlined_call_operand.<no memory space> [shape: f32[1,1], index: 21, kind: input, shape index: {}]
  %s22 = inlined_call_operand.hbm [shape: f32[1,1,8], index: 22, kind: output, shape index: {}]
  %s23 = sld [smem:[#allocation0]]
  $region98: #{tpu_custom_call.1} parent=0
    _
  %s25 = ssub.s32 1, %s23
  %s26 = scalar_select 0, %s25, %s23
  %v27 = vstv %s21
  %28 = vst [vmem:[#allocation4] sm:$0x1] %v27
  $region1: #{tpu_custom_call.1} parent=0
    #allocation5 [shape = 'u8[512]{0}', space=vmem, size = 0x400, scoped, tag = 'output window, operand 0, single buffered']
    #allocation6 [shape = 's32[1]{0}', space=sflag, size = 0x4, scoped, tag = 'scoped memory for tpu_custom_call.1']
    %29 = vsyncpa [#allocation6], 0
    // Predicated region
    $region2: #{tpu_custom_call.1} parent=1 // pred_check
      _
    $region3: #{tpu_custom_call.1} parent=1 // pred_check_branch
      %31 = sbr.rel (0) target = $region5
    $region4: #{tpu_custom_call.1} parent=1 // pred_region
      _
    $region5: #{tpu_custom_call.1} parent=1 // pred_fallthru
      _
    // Predicated region
    $region6: #{tpu_custom_call.1} parent=1 // pred_check
      _
    $region7: #{tpu_custom_call.1} parent=1 // pred_check_branch
      %33 = sbr.rel (0) target = $region9
    $region8: #{tpu_custom_call.1} parent=1 // pred_region
      _
    $region9: #{tpu_custom_call.1} parent=1 // pred_fallthru
      _
    // Predicated region
    $region10: #{tpu_custom_call.1} parent=1 // pred_check
      _
    $region11: #{tpu_custom_call.1} parent=1 // pred_check_branch
      %35 = sbr.rel (0) target = $region13
    $region12: #{tpu_custom_call.1} parent=1 // pred_region
      _
    $region13: #{tpu_custom_call.1} parent=1 // pred_fallthru
      _
    // Predicated region
    $region14: #{tpu_custom_call.1} parent=1 // pred_check
      _
    $region15: #{tpu_custom_call.1} parent=1 // pred_check_branch
      %37 = sbr.rel (0) target = $region17
    $region16: #{tpu_custom_call.1} parent=1 // pred_region
      _
    $region17: #{tpu_custom_call.1} parent=1 // pred_fallthru
      _
    // Predicated region
    $region18: #{tpu_custom_call.1} parent=1 // pred_check
      _
    $region19: #{tpu_custom_call.1} parent=1 // pred_check_branch
      %39 = sbr.rel (0) target = $region21
    $region20: #{tpu_custom_call.1} parent=1 // pred_region
      _
    $region21: #{tpu_custom_call.1} parent=1 // pred_fallthru
      _
    // Predicated region
    $region22: #{tpu_custom_call.1} parent=1 // pred_check
      _
    $region23: #{tpu_custom_call.1} parent=1 // pred_check_branch
      %41 = sbr.rel (0) target = $region25
    $region24: #{tpu_custom_call.1} parent=1 // pred_region
      _
    $region25: #{tpu_custom_call.1} parent=1 // pred_fallthru
      _
    // Predicated region
    $region26: #{tpu_custom_call.1} parent=1 // pred_check
      _
    $region27: #{tpu_custom_call.1} parent=1 // pred_check_branch
      %43 = sbr.rel (0) target = $region29
    $region28: #{tpu_custom_call.1} parent=1 // pred_region
      _
    $region29: #{tpu_custom_call.1} parent=1 // pred_fallthru
      _
    // Predicated region
    $region30: #{tpu_custom_call.1} parent=1 // pred_check
      _
    $region31: #{tpu_custom_call.1} parent=1 // pred_check_branch
      %45 = sbr.rel (0) target = $region33
    $region32: #{tpu_custom_call.1} parent=1 // pred_region
      _
    $region33: #{tpu_custom_call.1} parent=1 // pred_fallthru
      _
    // Predicated region
    $region34: #{tpu_custom_call.1} parent=1 // pred_check
      _
    $region35: #{tpu_custom_call.1} parent=1 // pred_check_branch
      %47 = sbr.rel (0) target = $region37
    $region36: #{tpu_custom_call.1} parent=1 // pred_region
      _
    $region37: #{tpu_custom_call.1} parent=1 // pred_fallthru
      _
    // Predicated region
    $region38: #{tpu_custom_call.1} parent=1 // pred_check
      _
    $region39: #{tpu_custom_call.1} parent=1 // pred_check_branch
      %49 = sbr.rel (0) target = $region41
    $region40: #{tpu_custom_call.1} parent=1 // pred_region
      _
    $region41: #{tpu_custom_call.1} parent=1 // pred_fallthru
      _
    // Predicated region
    $region42: #{tpu_custom_call.1} parent=1 // pred_check
      _
    $region43: #{tpu_custom_call.1} parent=1 // pred_check_branch
      %51 = sbr.rel (0) target = $region45
    $region44: #{tpu_custom_call.1} parent=1 // pred_region
      _
    $region45: #{tpu_custom_call.1} parent=1 // pred_fallthru
      _
    // Predicated region
    $region46: #{tpu_custom_call.1} parent=1 // pred_check
      _
    $region47: #{tpu_custom_call.1} parent=1 // pred_check_branch
      %53 = sbr.rel (0) target = $region49
    $region48: #{tpu_custom_call.1} parent=1 // pred_region
      _
    $region49: #{tpu_custom_call.1} parent=1 // pred_fallthru
      _
    // Predicated region
    $region50: #{tpu_custom_call.1} parent=1 // pred_check
      _
    $region51: #{tpu_custom_call.1} parent=1 // pred_check_branch
      %55 = sbr.rel (0) target = $region53
    $region52: #{tpu_custom_call.1} parent=1 // pred_region
      _
    $region53: #{tpu_custom_call.1} parent=1 // pred_fallthru
      _
    // Predicated region
    $region54: #{tpu_custom_call.1} parent=1 // pred_check
      _
    $region55: #{tpu_custom_call.1} parent=1 // pred_check_branch
      %57 = sbr.rel (0) target = $region57
    $region56: #{tpu_custom_call.1} parent=1 // pred_region
      _
    $region57: #{tpu_custom_call.1} parent=1 // pred_fallthru
      _
    // Predicated region
    $region58: #{tpu_custom_call.1} parent=1 // pred_check
      _
    $region59: #{tpu_custom_call.1} parent=1 // pred_check_branch
      %59 = sbr.rel (0) target = $region61
    $region60: #{tpu_custom_call.1} parent=1 // pred_region
      _
    $region61: #{tpu_custom_call.1} parent=1 // pred_fallthru
      _
    // Predicated region
    $region62: #{tpu_custom_call.1} parent=1 // pred_check
      _
    $region63: #{tpu_custom_call.1} parent=1 // pred_check_branch
      %61 = sbr.rel (0) target = $region65
    $region64: #{tpu_custom_call.1} parent=1 // pred_region
      _
    $region65: #{tpu_custom_call.1} parent=1 // pred_fallthru
      _
    // Predicated region
    $region66: #{tpu_custom_call.1} parent=1 // pred_check
      _
    $region67: #{tpu_custom_call.1} parent=1 // pred_check_branch
      %63 = sbr.rel (0) target = $region69
    $region68: #{tpu_custom_call.1} parent=1 // pred_region
      _
    $region69: #{tpu_custom_call.1} parent=1 // pred_fallthru
      _
    // Predicated region
    $region70: #{tpu_custom_call.1} parent=1 // pred_check
      _
    $region71: #{tpu_custom_call.1} parent=1 // pred_check_branch
      %65 = sbr.rel (0) target = $region73
    $region72: #{tpu_custom_call.1} parent=1 // pred_region
      _
    $region73: #{tpu_custom_call.1} parent=1 // pred_fallthru
      _
    // Predicated region
    $region74: #{tpu_custom_call.1} parent=1 // pred_check
      _
    $region75: #{tpu_custom_call.1} parent=1 // pred_check_branch
      %67 = sbr.rel (0) target = $region77
    $region76: #{tpu_custom_call.1} parent=1 // pred_region
      _
    $region77: #{tpu_custom_call.1} parent=1 // pred_fallthru
      _
    // Predicated region
    $region78: #{tpu_custom_call.1} parent=1 // pred_check
      _
    $region79: #{tpu_custom_call.1} parent=1 // pred_check_branch
      %69 = sbr.rel (0) target = $region81
    $region80: #{tpu_custom_call.1} parent=1 // pred_region
      _
    $region81: #{tpu_custom_call.1} parent=1 // pred_fallthru
      _
    // Predicated region
    $region82: #{tpu_custom_call.1} parent=1 // pred_check
      _
    $region83: #{tpu_custom_call.1} parent=1 // pred_check_branch
      %71 = sbr.rel (0) target = $region85
    $region84: #{tpu_custom_call.1} parent=1 // pred_region
      _
    $region85: #{tpu_custom_call.1} parent=1 // pred_fallthru
      _
    // Predicated region
    $region86: #{tpu_custom_call.1} parent=1 // pred_check
      _
    $region87: #{tpu_custom_call.1} parent=1 // pred_check_branch
      %73 = sbr.rel (0) target = $region89
    $region88: #{tpu_custom_call.1} parent=1 // pred_region
      _
    $region89: #{tpu_custom_call.1} parent=1 // pred_fallthru
      _
    %v75 = vld [vmem:[%s4] sm:$0x1]
    %v76 = vld [vmem:[%s5] sm:$0x1]
    %v77 = vld [vmem:[%s0] sm:$0xff]
    %v78 = vld [vmem:[%s0 + $0x8] sm:$0xff]
    %v79 = vld [vmem:[%s0 + $0x10] sm:$0xff]
    %v80 = vld [vmem:[%s0 + $0x18] sm:$0xff]
    %v81 = vld [vmem:[%s0 + $0x20] sm:$0xff]
    %v82 = vld [vmem:[%s0 + $0x28] sm:$0xff]
    %v83 = vld [vmem:[%s0 + $0x30] sm:$0xff]
    %v84 = vld [vmem:[%s0 + $0x38] sm:$0xff]
    %86 = vset.pattern.permute.xlu0 0
    %87 = vperm.xlu0 %86, %v77
    %v88 = vpop.permute.xlu0 %87
    %91 = vset.pattern.permute.xlu0 0
    %92 = vperm.xlu0 %91, %v78
    %v93 = vpop.permute.xlu0 %92
    %96 = vset.pattern.permute.xlu0 0
    %97 = vperm.xlu0 %96, %v79
    %v98 = vpop.permute.xlu0 %97
    %101 = vset.pattern.permute.xlu0 0
    %102 = vperm.xlu0 %101, %v80
    %v103 = vpop.permute.xlu0 %102
    %106 = vset.pattern.permute.xlu0 0
    %107 = vperm.xlu0 %106, %v81
    %v108 = vpop.permute.xlu0 %107
    %111 = vset.pattern.permute.xlu0 0
    %112 = vperm.xlu0 %111, %v82
    %v113 = vpop.permute.xlu0 %112
    %116 = vset.pattern.permute.xlu0 0
    %117 = vperm.xlu0 %116, %v83
    %v118 = vpop.permute.xlu0 %117
    %121 = vset.pattern.permute.xlu0 0
    %122 = vperm.xlu0 %121, %v84
    %v123 = vpop.permute.xlu0 %122
    %v126 = vperm.slane %v75, 0
    %v128 = vmul.f32 %v88, %v126
    %v129 = vmul.f32 %v93, %v126
    %v130 = vmul.f32 %v98, %v126
    %v131 = vmul.f32 %v103, %v126
    %v132 = vmul.f32 %v108, %v126
    %v133 = vmul.f32 %v113, %v126
    %v134 = vmul.f32 %v118, %v126
    %v135 = vmul.f32 %v123, %v126
    %v137 = vperm.slane %v76, 0
    %v139 = vadd.f32 %v128, %v137
    %v140 = vadd.f32 %v129, %v137
    %v141 = vadd.f32 %v130, %v137
    %v142 = vadd.f32 %v131, %v137
    %v143 = vadd.f32 %v132, %v137
    %v144 = vadd.f32 %v133, %v137
    %v145 = vadd.f32 %v134, %v137
    %v146 = vadd.f32 %v135, %v137
    %v147 = vld [vmem:[%s2] sm:$0xff]
    %v148 = vld [vmem:[%s2 + $0x8] sm:$0xff]
    %v149 = vld [vmem:[%s2 + $0x10] sm:$0xff]
    %v150 = vld [vmem:[%s2 + $0x18] sm:$0xff]
    %v151 = vld [vmem:[%s2 + $0x20] sm:$0xff]
    %v152 = vld [vmem:[%s2 + $0x28] sm:$0xff]
    %v153 = vld [vmem:[%s2 + $0x30] sm:$0xff]
    %v154 = vld [vmem:[%s2 + $0x38] sm:$0xff]
    %v155 = vadd.f32 %v139, %v147
    %v156 = vadd.f32 %v140, %v148
    %v157 = vadd.f32 %v141, %v149
    %v158 = vadd.f32 %v142, %v150
    %v159 = vadd.f32 %v143, %v151
    %v160 = vadd.f32 %v144, %v152
    %v161 = vadd.f32 %v145, %v153
    %v162 = vadd.f32 %v146, %v154
    %v163 = vld [vmem:[%s1] sm:$0xff]
    %165 = vset.pattern.permute.xlu0 0
    %166 = vperm.xlu0 %165, %v163
    %v167 = vpop.permute.xlu0 %166
    %v169 = vmul.f32 %v167, %v126
    %v170 = vadd.f32 %v169, %v137
    %v171 = vld [vmem:[%s3] sm:$0x1]
    %v173 = vperm.slane %v171, 0
    %v175 = vadd.f32 %v170, %v173
    %v176 = vld [vmem:[%s8] sm:$0xff]
    %v177 = vld [vmem:[%s8 + $0x8] sm:$0xff]
    %v178 = vld [vmem:[%s8 + $0x10] sm:$0xff]
    %v179 = vld [vmem:[%s8 + $0x18] sm:$0xff]
    %v180 = vld [vmem:[%s9] sm:$0x1]
    %v182 = vperm.slane %v180, 0
    %vm184 = vcmask 261120
    %v186 = vsel %vm184, %v155, 0
    %v189 = vsel %vm184, %v156, 0
    %v192 = vsel %vm184, %v157, 0
    %v195 = vsel %vm184, %v158, 0
    %v198 = vsel %vm184, %v159, 0
    %v201 = vsel %vm184, %v160, 0
    %v204 = vsel %vm184, %v161, 0
    %v207 = vsel %vm184, %v162, 0
    %209 = vmatpush.msra.mxu0 0.0
    %210 = vmatpush.msra.mxu0 0.0
    %211 = vmatpush.msra.mxu0 0.0
    %212 = vmatpush.msra.mxu0 0.0
    %213 = vmatpush.msra.mxu0 0.0
    %214 = vmatpush.msra.mxu0 0.0
    %215 = vmatpush.msra.mxu0 0.0
    %216 = vmatpush.msra.mxu0 0.0
    %217 = vmatpush.msra.mxu0 0.0
    %218 = vmatpush.msra.mxu0 0.0
    %219 = vmatpush.msra.mxu0 0.0
    %220 = vmatpush.msra.mxu0 0.0
    %221 = vmatpush.msra.mxu0 %v179
    %222 = vmatpush.msra.mxu0 %v178
    %223 = vmatpush.msra.mxu0 %v177
    %224 = vmatpush.msra.mxu0 %v176
    %225 = vmatmul.f32.gmra.mxu0 %v186
    %v226 = vpop.f32.mrf.mxu0
    %v227 = vadd.f32 %v182, %v226
    %228 = vmatmul.f32.gmra.mxu0 %v189
    %v229 = vpop.f32.mrf.mxu0
    %v230 = vadd.f32 %v182, %v229
    %231 = vmatmul.f32.gmra.mxu0 %v192
    %v232 = vpop.f32.mrf.mxu0
    %v233 = vadd.f32 %v182, %v232
    %234 = vmatmul.f32.gmra.mxu0 %v195
    %v235 = vpop.f32.mrf.mxu0
    %v236 = vadd.f32 %v182, %v235
    %237 = vmatmul.f32.gmra.mxu0 %v198
    %v238 = vpop.f32.mrf.mxu0
    %v239 = vadd.f32 %v182, %v238
    %240 = vmatmul.f32.gmra.mxu0 %v201
    %v241 = vpop.f32.mrf.mxu0
    %v242 = vadd.f32 %v182, %v241
    %243 = vmatmul.f32.gmra.mxu0 %v204
    %v244 = vpop.f32.mrf.mxu0
    %v245 = vadd.f32 %v182, %v244
    %246 = vmatmul.f32.gmra.mxu0 %v207
    %v247 = vpop.f32.mrf.mxu0
    %v248 = vadd.f32 %v182, %v247
    %249 = vdwg.mxu0
    %vm250 = vcmask 523264
    %251 = vst.msk [vmem:[#allocation2] sm:$0xff] %vm250, %v227
    %252 = vst.msk [vmem:[#allocation2 + $0x8] sm:$0xff] %vm250, %v230
    %253 = vst.msk [vmem:[#allocation2 + $0x10] sm:$0xff] %vm250, %v233
    %254 = vst.msk [vmem:[#allocation2 + $0x18] sm:$0xff] %vm250, %v236
    %255 = vst.msk [vmem:[#allocation2 + $0x20] sm:$0xff] %vm250, %v239
    %256 = vst.msk [vmem:[#allocation2 + $0x28] sm:$0xff] %vm250, %v242
    %257 = vst.msk [vmem:[#allocation2 + $0x30] sm:$0xff] %vm250, %v245
    %258 = vst.msk [vmem:[#allocation2 + $0x38] sm:$0xff] %vm250, %v248
    %v259 = vld [vmem:[%s6] sm:$0xff]
    %v260 = vld [vmem:[%s6 + $0x8] sm:$0xff]
    %v261 = vld [vmem:[%s6 + $0x10] sm:$0xff]
    %v262 = vld [vmem:[%s6 + $0x18] sm:$0xff]
    %v263 = vld [vmem:[%s7] sm:$0x1]
    %v265 = vperm.slane %v263, 0
    %v268 = vsel %vm184, %v175, 0
    %270 = vmatpush.msra.mxu0 0.0
    %271 = vmatpush.msra.mxu0 0.0
    %272 = vmatpush.msra.mxu0 0.0
    %273 = vmatpush.msra.mxu0 0.0
    %274 = vmatpush.msra.mxu0 0.0
    %275 = vmatpush.msra.mxu0 0.0
    %276 = vmatpush.msra.mxu0 0.0
    %277 = vmatpush.msra.mxu0 0.0
    %278 = vmatpush.msra.mxu0 0.0
    %279 = vmatpush.msra.mxu0 0.0
    %280 = vmatpush.msra.mxu0 0.0
    %281 = vmatpush.msra.mxu0 0.0
    %282 = vmatpush.msra.mxu0 %v262
    %283 = vmatpush.msra.mxu0 %v261
    %284 = vmatpush.msra.mxu0 %v260
    %285 = vmatpush.msra.mxu0 %v259
    %286 = vmatmul.f32.gmra.mxu0 %v268
    %v287 = vpop.f32.mrf.mxu0
    %v288 = vadd.f32 %v265, %v287
    %289 = vdwg.mxu0
    %v290 = vlaneseq
    %v291 = vand.u32 %v290, 127
    %v292 = vlaneseq
    %v293 = vshrl.u32 %v292, 7
    %v294 = vmul.u32 %v293, 8
    %vm295 = vcmp.ge.s32.totalorder %v291, %v294
    %v296 = vadd.s32 %v293, 1
    %v297 = vmul.u32 %v296, 8
    %vm298 = vcmp.lt.s32.totalorder %v291, %v297
    %vm299 = vmand %vm295, %vm298
    %v300 = vld [vmem:[%s10] sm:$0xff]
    %v301 = vld [vmem:[%s10 + $0x8] sm:$0xff]
    %v302 = vld [vmem:[%s10 + $0x10] sm:$0xff]
    %v303 = vld [vmem:[%s10 + $0x18] sm:$0xff]
    %v304 = vld [vmem:[%s11] sm:$0x1]
    %v305 = vld [vmem:[#allocation2] sm:$0xff]
    %v306 = vld [vmem:[#allocation2 + $0x8] sm:$0xff]
    %v307 = vld [vmem:[#allocation2 + $0x10] sm:$0xff]
    %v308 = vld [vmem:[#allocation2 + $0x18] sm:$0xff]
    %v309 = vld [vmem:[#allocation2 + $0x20] sm:$0xff]
    %v310 = vld [vmem:[#allocation2 + $0x28] sm:$0xff]
    %v311 = vld [vmem:[#allocation2 + $0x30] sm:$0xff]
    %v312 = vld [vmem:[#allocation2 + $0x38] sm:$0xff]
    %vm313 = vcmask 130048
    %v315 = vsel %vm313, %v288, 0
    %v318 = vsel %vm313, %v305, 0
    %v321 = vsel %vm313, %v306, 0
    %v324 = vsel %vm313, %v307, 0
    %v327 = vsel %vm313, %v308, 0
    %v330 = vsel %vm313, %v309, 0
    %v333 = vsel %vm313, %v310, 0
    %v336 = vsel %vm313, %v311, 0
    %v339 = vsel %vm313, %v312, 0
    %341 = vmatpush.xpose.msra.mxu0 0.0
    %342 = vmatpush.xpose.msra.mxu0 0.0
    %343 = vmatpush.xpose.msra.mxu0 0.0
    %344 = vmatpush.xpose.msra.mxu0 0.0
    %345 = vmatpush.xpose.msra.mxu0 0.0
    %346 = vmatpush.xpose.msra.mxu0 0.0
    %347 = vmatpush.xpose.msra.mxu0 0.0
    %348 = vmatpush.xpose.msra.mxu0 0.0
    %349 = vmatpush.xpose.msra.mxu0 %v339
    %350 = vmatpush.xpose.msra.mxu0 %v336
    %351 = vmatpush.xpose.msra.mxu0 %v333
    %352 = vmatpush.xpose.msra.mxu0 %v330
    %353 = vmatpush.xpose.msra.mxu0 %v327
    %354 = vmatpush.xpose.msra.mxu0 %v324
    %355 = vmatpush.xpose.msra.mxu0 %v321
    %356 = vmatpush.xpose.msra.mxu0 %v318
    %357 = vmatmul.f32.gmra.mxu0 %v315
    %v358 = vpop.f32.mrf.mxu0
    %v359 = vadd.f32 0.0, %v358
    %360 = vdwg.mxu0
    %v361 = vsel %vm299, %v359, -1e+30
    %v362 = vsel %vm250, %v361, -inf
    %363 = vmax.xlane.f32.xlu0 %v362
    %v364 = vpop.xlane.xlu0 %363
    %v365 = vsub.f32 %v361, %v364
    %v366 = vmul.f32 %v365, 1.442695
    %v367 = vpow.pop %v366
    %v368 = vsel %vm250, %v367, 0.0
    %369 = vadd.xlane.f32.xlu0 %v368
    %v370 = vpop.xlane.xlu0 %369
    %v371 = vrcp.pop %v370
    %v372 = vmul.f32 %v367, %v371
    %373 = vrot.lane.b32.xlu0 %v305, 96
    %v374 = vpop.permute.xlu0 %373
    %375 = vrot.lane.b32.xlu0 %v306, 96
    %v376 = vpop.permute.xlu0 %375
    %377 = vrot.lane.b32.xlu0 %v307, 96
    %v378 = vpop.permute.xlu0 %377
    %379 = vrot.lane.b32.xlu0 %v308, 96
    %v380 = vpop.permute.xlu0 %379
    %381 = vrot.lane.b32.xlu0 %v309, 96
    %v382 = vpop.permute.xlu0 %381
    %383 = vrot.lane.b32.xlu0 %v310, 96
    %v384 = vpop.permute.xlu0 %383
    %385 = vrot.lane.b32.xlu0 %v311, 96
    %v386 = vpop.permute.xlu0 %385
    %387 = vrot.lane.b32.xlu0 %v312, 96
    %v388 = vpop.permute.xlu0 %387
    %v398 = vsel %vm250, %v372, 0
    %400 = vmatpush.msra.mxu0 0.0
    %401 = vmatpush.msra.mxu0 0.0
    %402 = vmatpush.msra.mxu0 0.0
    %403 = vmatpush.msra.mxu0 0.0
    %404 = vmatpush.msra.mxu0 0.0
    %405 = vmatpush.msra.mxu0 0.0
    %406 = vmatpush.msra.mxu0 0.0
    %407 = vmatpush.msra.mxu0 0.0
    %408 = vmatpush.msra.mxu0 %v388
    %409 = vmatpush.msra.mxu0 %v386
    %410 = vmatpush.msra.mxu0 %v384
    %411 = vmatpush.msra.mxu0 %v382
    %412 = vmatpush.msra.mxu0 %v380
    %413 = vmatpush.msra.mxu0 %v378
    %414 = vmatpush.msra.mxu0 %v376
    %415 = vmatpush.msra.mxu0 %v374
    %416 = vmatmul.f32.gmra.mxu0 %v398
    %v417 = vpop.f32.mrf.mxu0
    %v418 = vadd.f32 0.0, %v417
    %419 = vdwg.mxu0
    %v421 = vsel %vm313, %v418, 0
    %423 = vmatpush.msra.mxu0 0.0
    %424 = vmatpush.msra.mxu0 0.0
    %425 = vmatpush.msra.mxu0 0.0
    %426 = vmatpush.msra.mxu0 0.0
    %427 = vmatpush.msra.mxu0 0.0
    %428 = vmatpush.msra.mxu0 0.0
    %429 = vmatpush.msra.mxu0 0.0
    %430 = vmatpush.msra.mxu0 0.0
    %431 = vmatpush.msra.mxu0 0.0
    %432 = vmatpush.msra.mxu0 0.0
    %433 = vmatpush.msra.mxu0 0.0
    %434 = vmatpush.msra.mxu0 0.0
    %435 = vmatpush.msra.mxu0 0.0
    %436 = vmatpush.msra.mxu0 0.0
    %437 = vmatpush.msra.mxu0 %v301
    %438 = vmatpush.msra.mxu0 %v300
    %439 = vmatmul.f32.gmra.mxu0 %v421
    %v440 = vpop.f32.mrf.mxu0
    %v441 = vadd.f32 0.0, %v440
    %442 = vdwg.mxu0
    %v444 = vperm.slane %v304, 0
    %v446 = vadd.f32 %v444, %v441
    %447 = vrot.lane.b32.xlu0 %v288, 112
    %v448 = vpop.permute.xlu0 %447
    %449 = vrot.lane.b32.xlu0 %v305, 112
    %v450 = vpop.permute.xlu0 %449
    %451 = vrot.lane.b32.xlu0 %v306, 112
    %v452 = vpop.permute.xlu0 %451
    %453 = vrot.lane.b32.xlu0 %v307, 112
    %v454 = vpop.permute.xlu0 %453
    %455 = vrot.lane.b32.xlu0 %v308, 112
    %v456 = vpop.permute.xlu0 %455
    %457 = vrot.lane.b32.xlu0 %v309, 112
    %v458 = vpop.permute.xlu0 %457
    %459 = vrot.lane.b32.xlu0 %v310, 112
    %v460 = vpop.permute.xlu0 %459
    %461 = vrot.lane.b32.xlu0 %v311, 112
    %v462 = vpop.permute.xlu0 %461
    %463 = vrot.lane.b32.xlu0 %v312, 112
    %v464 = vpop.permute.xlu0 %463
    %v465 = vsel %vm313, %v448, 0
    %v467 = vsel %vm313, %v450, 0
    %v469 = vsel %vm313, %v452, 0
    %v471 = vsel %vm313, %v454, 0
    %v473 = vsel %vm313, %v456, 0
    %v475 = vsel %vm313, %v458, 0
    %v477 = vsel %vm313, %v460, 0
    %v479 = vsel %vm313, %v462, 0
    %v481 = vsel %vm313, %v464, 0
    %483 = vmatpush.xpose.msra.mxu0 0.0
    %484 = vmatpush.xpose.msra.mxu0 0.0
    %485 = vmatpush.xpose.msra.mxu0 0.0
    %486 = vmatpush.xpose.msra.mxu0 0.0
    %487 = vmatpush.xpose.msra.mxu0 0.0
    %488 = vmatpush.xpose.msra.mxu0 0.0
    %489 = vmatpush.xpose.msra.mxu0 0.0
    %490 = vmatpush.xpose.msra.mxu0 0.0
    %491 = vmatpush.xpose.msra.mxu0 %v481
    %492 = vmatpush.xpose.msra.mxu0 %v479
    %493 = vmatpush.xpose.msra.mxu0 %v477
    %494 = vmatpush.xpose.msra.mxu0 %v475
    %495 = vmatpush.xpose.msra.mxu0 %v473
    %496 = vmatpush.xpose.msra.mxu0 %v471
    %497 = vmatpush.xpose.msra.mxu0 %v469
    %498 = vmatpush.xpose.msra.mxu0 %v467
    %499 = vmatmul.f32.gmra.mxu0 %v465
    %v500 = vpop.f32.mrf.mxu0
    %v501 = vadd.f32 0.0, %v500
    %502 = vdwg.mxu0
    %v503 = vsel %vm299, %v501, -1e+30
    %v504 = vsel %vm250, %v503, -inf
    %505 = vmax.xlane.f32.xlu0 %v504
    %v506 = vpop.xlane.xlu0 %505
    %v507 = vsub.f32 %v503, %v506
    %v508 = vmul.f32 %v507, 1.442695
    %v509 = vpow.pop %v508
    %v510 = vsel %vm250, %v509, 0.0
    %511 = vadd.xlane.f32.xlu0 %v510
    %v512 = vpop.xlane.xlu0 %511
    %v513 = vrcp.pop %v512
    %v514 = vmul.f32 %v509, %v513
    %515 = vrot.lane.b32.xlu0 %v305, 80
    %v516 = vpop.permute.xlu0 %515
    %517 = vrot.lane.b32.xlu0 %v306, 80
    %v518 = vpop.permute.xlu0 %517
    %519 = vrot.lane.b32.xlu0 %v307, 80
    %v520 = vpop.permute.xlu0 %519
    %521 = vrot.lane.b32.xlu0 %v308, 80
    %v522 = vpop.permute.xlu0 %521
    %523 = vrot.lane.b32.xlu0 %v309, 80
    %v524 = vpop.permute.xlu0 %523
    %525 = vrot.lane.b32.xlu0 %v310, 80
    %v526 = vpop.permute.xlu0 %525
    %527 = vrot.lane.b32.xlu0 %v311, 80
    %v528 = vpop.permute.xlu0 %527
    %529 = vrot.lane.b32.xlu0 %v312, 80
    %v530 = vpop.permute.xlu0 %529
    %v540 = vsel %vm250, %v514, 0
    %542 = vmatpush.msra.mxu0 0.0
    %543 = vmatpush.msra.mxu0 0.0
    %544 = vmatpush.msra.mxu0 0.0
    %545 = vmatpush.msra.mxu0 0.0
    %546 = vmatpush.msra.mxu0 0.0
    %547 = vmatpush.msra.mxu0 0.0
    %548 = vmatpush.msra.mxu0 0.0
    %549 = vmatpush.msra.mxu0 0.0
    %550 = vmatpush.msra.mxu0 %v530
    %551 = vmatpush.msra.mxu0 %v528
    %552 = vmatpush.msra.mxu0 %v526
    %553 = vmatpush.msra.mxu0 %v524
    %554 = vmatpush.msra.mxu0 %v522
    %555 = vmatpush.msra.mxu0 %v520
    %556 = vmatpush.msra.mxu0 %v518
    %557 = vmatpush.msra.mxu0 %v516
    %558 = vmatmul.f32.gmra.mxu0 %v540
    %v559 = vpop.f32.mrf.mxu0
    %v560 = vadd.f32 0.0, %v559
    %561 = vdwg.mxu0
    %v563 = vsel %vm313, %v560, 0
    %565 = vmatpush.msra.mxu0 0.0
    %566 = vmatpush.msra.mxu0 0.0
    %567 = vmatpush.msra.mxu0 0.0
    %568 = vmatpush.msra.mxu0 0.0
    %569 = vmatpush.msra.mxu0 0.0
    %570 = vmatpush.msra.mxu0 0.0
    %571 = vmatpush.msra.mxu0 0.0
    %572 = vmatpush.msra.mxu0 0.0
    %573 = vmatpush.msra.mxu0 0.0
    %574 = vmatpush.msra.mxu0 0.0
    %575 = vmatpush.msra.mxu0 0.0
    %576 = vmatpush.msra.mxu0 0.0
    %577 = vmatpush.msra.mxu0 0.0
    %578 = vmatpush.msra.mxu0 0.0
    %579 = vmatpush.msra.mxu0 %v303
    %580 = vmatpush.msra.mxu0 %v302
    %581 = vmatmul.f32.gmra.mxu0 %v563
    %v582 = vpop.f32.mrf.mxu0
    %v583 = vadd.f32 0.0, %v582
    %584 = vdwg.mxu0
    %v585 = vadd.f32 %v446, %v583
    %v586 = vadd.f32 %v175, %v585
    %587 = vst.msk [vmem:[#allocation3] sm:$0xff] %vm184, %v586
    %v588 = vld [vmem:[#allocation3] sm:$0xff]
    %v589 = vsel %vm184, %v588, 0.0
    %590 = vadd.xlane.f32.xlu0 %v589
    %v591 = vpop.xlane.xlu0 %590
    %v592 = vrcp.pop 32.0
    %v593 = vmul.f32 32.0, %v592
    %v594 = vsub.f32 1.0, %v593
    %v595 = vmul.f32 %v592, %v594
    %v596 = vadd.f32 %v592, %v595
    %vm597 = vweird.f32 %v592
    %v598 = vsel %vm597, %v592, %v596
    %v599 = vmul.f32 %v591, %v598
    %v600 = vsub.f32 %v588, %v599
    %v601 = vmul.f32 %v600, %v600
    %v602 = vsel %vm184, %v601, 0.0
    %603 = vadd.xlane.f32.xlu0 %v602
    %v604 = vpop.xlane.xlu0 %603
    %v605 = vmul.f32 %v604, %v598
    %v606 = vadd.f32 %v605, 1e-05
    %v607 = vrsqrt.pop %v606
    %v608 = vmul.f32 %v607, %v606
    %v609 = vmul.f32 %v608, %v607
    %v610 = vmul.f32 0.5, %v609
    %v611 = vsub.f32 1.5, %v610
    %v612 = vmul.f32 %v607, %v611
    %vm613 = vweird.f32 %v606
    %vm614 = vweird.f32 %v607
    %vm615 = vmor %vm613, %vm614
    %v616 = vsel %vm615, %v607, %v612
    %v617 = vmul.f32 %v600, %v616
    %v618 = vld [vmem:[%s12] sm:$0x1]
    %v620 = vperm.slane %v618, 0
    %v622 = vmul.f32 %v617, %v620
    %v623 = vld [vmem:[%s13] sm:$0x1]
    %v625 = vperm.slane %v623, 0
    %v627 = vadd.f32 %v622, %v625
    %v628 = vpack.c.bf16 %v627, %v627
    %v629 = vld [vmem:[%s14] sm:$0xff]
    %v630 = vld [vmem:[%s14 + $0x8] sm:$0xff]
    %v631 = vld [vmem:[%s14 + $0x10] sm:$0xff]
    %v632 = vld [vmem:[%s14 + $0x18] sm:$0xff]
    %v633 = vld [vmem:[%s14 + $0x20] sm:$0xff]
    %v634 = vld [vmem:[%s14 + $0x28] sm:$0xff]
    %v635 = vld [vmem:[%s14 + $0x30] sm:$0xff]
    %v636 = vld [vmem:[%s14 + $0x38] sm:$0xff]
    %v637 = vld [vmem:[%s14 + $0x40] sm:$0xff]
    %v638 = vld [vmem:[%s14 + $0x48] sm:$0xff]
    %v639 = vld [vmem:[%s14 + $0x50] sm:$0xff]
    %v640 = vld [vmem:[%s14 + $0x58] sm:$0xff]
    %v641 = vld [vmem:[%s14 + $0x60] sm:$0xff]
    %v642 = vld [vmem:[%s14 + $0x68] sm:$0xff]
    %v643 = vld [vmem:[%s14 + $0x70] sm:$0xff]
    %v644 = vld [vmem:[%s14 + $0x78] sm:$0xff]
    %v645 = vld [vmem:[%s14 + $0x80] sm:$0xff]
    %v646 = vld [vmem:[%s14 + $0x88] sm:$0xff]
    %v647 = vld [vmem:[%s14 + $0x90] sm:$0xff]
    %v648 = vld [vmem:[%s14 + $0x98] sm:$0xff]
    %v649 = vld [vmem:[%s14 + $0xa0] sm:$0xff]
    %v650 = vld [vmem:[%s14 + $0xa8] sm:$0xff]
    %v651 = vld [vmem:[%s14 + $0xb0] sm:$0xff]
    %v652 = vld [vmem:[%s14 + $0xb8] sm:$0xff]
    %v653 = vld [vmem:[%s14 + $0xc0] sm:$0xff]
    %v654 = vld [vmem:[%s14 + $0xc8] sm:$0xff]
    %v655 = vld [vmem:[%s14 + $0xd0] sm:$0xff]
    %v656 = vld [vmem:[%s14 + $0xd8] sm:$0xff]
    %v657 = vld [vmem:[%s14 + $0xe0] sm:$0xff]
    %v658 = vld [vmem:[%s14 + $0xe8] sm:$0xff]
    %v659 = vld [vmem:[%s14 + $0xf0] sm:$0xff]
    %v660 = vld [vmem:[%s14 + $0xf8] sm:$0xff]
    %v693 = vunpack.c.l.b16 %v629
    %v694 = vunpack.c.h.b16 %v629
    %v695 = vunpack.c.l.b16 %v630
    %v696 = vunpack.c.h.b16 %v630
    %v697 = vunpack.c.l.b16 %v631
    %v698 = vunpack.c.h.b16 %v631
    %v699 = vunpack.c.l.b16 %v632
    %v700 = vunpack.c.h.b16 %v632
    %v701 = vunpack.c.l.b16 %v633
    %v702 = vunpack.c.h.b16 %v633
    %v703 = vunpack.c.l.b16 %v634
    %v704 = vunpack.c.h.b16 %v634
    %v705 = vunpack.c.l.b16 %v635
    %v706 = vunpack.c.h.b16 %v635
    %v707 = vunpack.c.l.b16 %v636
    %v708 = vunpack.c.h.b16 %v636
    %v709 = vunpack.c.l.b16 %v637
    %v710 = vunpack.c.h.b16 %v637
    %v711 = vunpack.c.l.b16 %v638
    %v712 = vunpack.c.h.b16 %v638
    %v713 = vunpack.c.l.b16 %v639
    %v714 = vunpack.c.h.b16 %v639
    %v715 = vunpack.c.l.b16 %v640
    %v716 = vunpack.c.h.b16 %v640
    %v717 = vunpack.c.l.b16 %v641
    %v718 = vunpack.c.h.b16 %v641
    %v719 = vunpack.c.l.b16 %v642
    %v720 = vunpack.c.h.b16 %v642
    %v721 = vunpack.c.l.b16 %v643
    %v722 = vunpack.c.h.b16 %v643
    %v723 = vunpack.c.l.b16 %v644
    %v724 = vunpack.c.h.b16 %v644
    %v725 = vunpack.c.l.b16 %v645
    %v726 = vunpack.c.h.b16 %v645
    %v727 = vunpack.c.l.b16 %v646
    %v728 = vunpack.c.h.b16 %v646
    %v729 = vunpack.c.l.b16 %v647
    %v730 = vunpack.c.h.b16 %v647
    %v731 = vunpack.c.l.b16 %v648
    %v732 = vunpack.c.h.b16 %v648
    %v733 = vunpack.c.l.b16 %v649
    %v734 = vunpack.c.h.b16 %v649
    %v735 = vunpack.c.l.b16 %v650
    %v736 = vunpack.c.h.b16 %v650
    %v737 = vunpack.c.l.b16 %v651
    %v738 = vunpack.c.h.b16 %v651
    %v739 = vunpack.c.l.b16 %v652
    %v740 = vunpack.c.h.b16 %v652
    %v741 = vunpack.c.l.b16 %v653
    %v742 = vunpack.c.h.b16 %v653
    %v743 = vunpack.c.l.b16 %v654
    %v744 = vunpack.c.h.b16 %v654
    %v745 = vunpack.c.l.b16 %v655
    %v746 = vunpack.c.h.b16 %v655
    %v747 = vunpack.c.l.b16 %v656
    %v748 = vunpack.c.h.b16 %v656
    %v749 = vunpack.c.l.b16 %v657
    %v750 = vunpack.c.h.b16 %v657
    %v751 = vunpack.c.l.b16 %v658
    %v752 = vunpack.c.h.b16 %v658
    %v753 = vunpack.c.l.b16 %v659
    %v754 = vunpack.c.h.b16 %v659
    %v755 = vunpack.c.l.b16 %v660
    %v756 = vunpack.c.h.b16 %v660
    %v757 = vpack.c.b16 %v709, %v693
    %v758 = vpack.c.b16 %v710, %v694
    %v759 = vpack.c.b16 %v711, %v695
    %v760 = vpack.c.b16 %v712, %v696
    %v761 = vpack.c.b16 %v713, %v697
    %v762 = vpack.c.b16 %v714, %v698
    %v763 = vpack.c.b16 %v715, %v699
    %v764 = vpack.c.b16 %v716, %v700
    %v765 = vpack.c.b16 %v717, %v701
    %v766 = vpack.c.b16 %v718, %v702
    %v767 = vpack.c.b16 %v719, %v703
    %v768 = vpack.c.b16 %v720, %v704
    %v769 = vpack.c.b16 %v721, %v705
    %v770 = vpack.c.b16 %v722, %v706
    %v771 = vpack.c.b16 %v723, %v707
    %v772 = vpack.c.b16 %v724, %v708
    %v773 = vpack.c.b16 %v741, %v725
    %v774 = vpack.c.b16 %v742, %v726
    %v775 = vpack.c.b16 %v743, %v727
    %v776 = vpack.c.b16 %v744, %v728
    %v777 = vpack.c.b16 %v745, %v729
    %v778 = vpack.c.b16 %v746, %v730
    %v779 = vpack.c.b16 %v747, %v731
    %v780 = vpack.c.b16 %v748, %v732
    %v781 = vpack.c.b16 %v749, %v733
    %v782 = vpack.c.b16 %v750, %v734
    %v783 = vpack.c.b16 %v751, %v735
    %v784 = vpack.c.b16 %v752, %v736
    %v785 = vpack.c.b16 %v753, %v737
    %v786 = vpack.c.b16 %v754, %v738
    %v787 = vpack.c.b16 %v755, %v739
    %v788 = vpack.c.b16 %v756, %v740
    %v822 = vsel %vm184, %v628, 0
    %824 = vmatpush.bf16.msra.mxu0 0
    %825 = vmatpush.bf16.msra.mxu0 0
    %826 = vmatpush.bf16.msra.mxu0 0
    %827 = vmatpush.bf16.msra.mxu0 0
    %828 = vmatpush.bf16.msra.mxu0 0
    %829 = vmatpush.bf16.msra.mxu0 0
    %830 = vmatpush.bf16.msra.mxu0 %v773
    %831 = vmatpush.bf16.msra.mxu0 %v757
    %832 = vmatmul.bf16.gmra.mxu0 %v822
    %v833 = vpop.f32.mrf.mxu0
    %v834 = vadd.f32 0.0, %v833
    %v835 = vpop.f32.mrf.mxu0
    %836 = vdwg.mxu0
    %837 = vmatpush.bf16.msra.mxu0 0
    %838 = vmatpush.bf16.msra.mxu0 0
    %839 = vmatpush.bf16.msra.mxu0 0
    %840 = vmatpush.bf16.msra.mxu0 0
    %841 = vmatpush.bf16.msra.mxu0 0
    %842 = vmatpush.bf16.msra.mxu0 0
    %843 = vmatpush.bf16.msra.mxu0 %v774
    %844 = vmatpush.bf16.msra.mxu0 %v758
    %845 = vmatmul.bf16.gmra.mxu0 %v822
    %v846 = vpop.f32.mrf.mxu0
    %v847 = vadd.f32 0.0, %v846
    %v848 = vpop.f32.mrf.mxu0
    %849 = vdwg.mxu0
    %850 = vmatpush.bf16.msra.mxu0 0
    %851 = vmatpush.bf16.msra.mxu0 0
    %852 = vmatpush.bf16.msra.mxu0 0
    %853 = vmatpush.bf16.msra.mxu0 0
    %854 = vmatpush.bf16.msra.mxu0 0
    %855 = vmatpush.bf16.msra.mxu0 0
    %856 = vmatpush.bf16.msra.mxu0 %v775
    %857 = vmatpush.bf16.msra.mxu0 %v759
    %858 = vmatmul.bf16.gmra.mxu0 %v822
    %v859 = vpop.f32.mrf.mxu0
    %v860 = vadd.f32 0.0, %v859
    %v861 = vpop.f32.mrf.mxu0
    %862 = vdwg.mxu0
    %863 = vmatpush.bf16.msra.mxu0 0
    %864 = vmatpush.bf16.msra.mxu0 0
    %865 = vmatpush.bf16.msra.mxu0 0
    %866 = vmatpush.bf16.msra.mxu0 0
    %867 = vmatpush.bf16.msra.mxu0 0
    %868 = vmatpush.bf16.msra.mxu0 0
    %869 = vmatpush.bf16.msra.mxu0 %v776
    %870 = vmatpush.bf16.msra.mxu0 %v760
    %871 = vmatmul.bf16.gmra.mxu0 %v822
    %v872 = vpop.f32.mrf.mxu0
    %v873 = vadd.f32 0.0, %v872
    %v874 = vpop.f32.mrf.mxu0
    %875 = vdwg.mxu0
    %876 = vmatpush.bf16.msra.mxu0 0
    %877 = vmatpush.bf16.msra.mxu0 0
    %878 = vmatpush.bf16.msra.mxu0 0
    %879 = vmatpush.bf16.msra.mxu0 0
    %880 = vmatpush.bf16.msra.mxu0 0
    %881 = vmatpush.bf16.msra.mxu0 0
    %882 = vmatpush.bf16.msra.mxu0 %v777
    %883 = vmatpush.bf16.msra.mxu0 %v761
    %884 = vmatmul.bf16.gmra.mxu0 %v822
    %v885 = vpop.f32.mrf.mxu0
    %v886 = vadd.f32 0.0, %v885
    %v887 = vpop.f32.mrf.mxu0
    %888 = vdwg.mxu0
    %889 = vmatpush.bf16.msra.mxu0 0
    %890 = vmatpush.bf16.msra.mxu0 0
    %891 = vmatpush.bf16.msra.mxu0 0
    %892 = vmatpush.bf16.msra.mxu0 0
    %893 = vmatpush.bf16.msra.mxu0 0
    %894 = vmatpush.bf16.msra.mxu0 0
    %895 = vmatpush.bf16.msra.mxu0 %v778
    %896 = vmatpush.bf16.msra.mxu0 %v762
    %897 = vmatmul.bf16.gmra.mxu0 %v822
    %v898 = vpop.f32.mrf.mxu0
    %v899 = vadd.f32 0.0, %v898
    %v900 = vpop.f32.mrf.mxu0
    %901 = vdwg.mxu0
    %902 = vmatpush.bf16.msra.mxu0 0
    %903 = vmatpush.bf16.msra.mxu0 0
    %904 = vmatpush.bf16.msra.mxu0 0
    %905 = vmatpush.bf16.msra.mxu0 0
    %906 = vmatpush.bf16.msra.mxu0 0
    %907 = vmatpush.bf16.msra.mxu0 0
    %908 = vmatpush.bf16.msra.mxu0 %v779
    %909 = vmatpush.bf16.msra.mxu0 %v763
    %910 = vmatmul.bf16.gmra.mxu0 %v822
    %v911 = vpop.f32.mrf.mxu0
    %v912 = vadd.f32 0.0, %v911
    %v913 = vpop.f32.mrf.mxu0
    %914 = vdwg.mxu0
    %915 = vmatpush.bf16.msra.mxu0 0
    %916 = vmatpush.bf16.msra.mxu0 0
    %917 = vmatpush.bf16.msra.mxu0 0
    %918 = vmatpush.bf16.msra.mxu0 0
    %919 = vmatpush.bf16.msra.mxu0 0
    %920 = vmatpush.bf16.msra.mxu0 0
    %921 = vmatpush.bf16.msra.mxu0 %v780
    %922 = vmatpush.bf16.msra.mxu0 %v764
    %923 = vmatmul.bf16.gmra.mxu0 %v822
    %v924 = vpop.f32.mrf.mxu0
    %v925 = vadd.f32 0.0, %v924
    %v926 = vpop.f32.mrf.mxu0
    %927 = vdwg.mxu0
    %928 = vmatpush.bf16.msra.mxu0 0
    %929 = vmatpush.bf16.msra.mxu0 0
    %930 = vmatpush.bf16.msra.mxu0 0
    %931 = vmatpush.bf16.msra.mxu0 0
    %932 = vmatpush.bf16.msra.mxu0 0
    %933 = vmatpush.bf16.msra.mxu0 0
    %934 = vmatpush.bf16.msra.mxu0 %v781
    %935 = vmatpush.bf16.msra.mxu0 %v765
    %936 = vmatmul.bf16.gmra.mxu0 %v822
    %v937 = vpop.f32.mrf.mxu0
    %v938 = vadd.f32 0.0, %v937
    %v939 = vpop.f32.mrf.mxu0
    %940 = vdwg.mxu0
    %941 = vmatpush.bf16.msra.mxu0 0
    %942 = vmatpush.bf16.msra.mxu0 0
    %943 = vmatpush.bf16.msra.mxu0 0
    %944 = vmatpush.bf16.msra.mxu0 0
    %945 = vmatpush.bf16.msra.mxu0 0
    %946 = vmatpush.bf16.msra.mxu0 0
    %947 = vmatpush.bf16.msra.mxu0 %v782
    %948 = vmatpush.bf16.msra.mxu0 %v766
    %949 = vmatmul.bf16.gmra.mxu0 %v822
    %v950 = vpop.f32.mrf.mxu0
    %v951 = vadd.f32 0.0, %v950
    %v952 = vpop.f32.mrf.mxu0
    %953 = vdwg.mxu0
    %954 = vmatpush.bf16.msra.mxu0 0
    %955 = vmatpush.bf16.msra.mxu0 0
    %956 = vmatpush.bf16.msra.mxu0 0
    %957 = vmatpush.bf16.msra.mxu0 0
    %958 = vmatpush.bf16.msra.mxu0 0
    %959 = vmatpush.bf16.msra.mxu0 0
    %960 = vmatpush.bf16.msra.mxu0 %v783
    %961 = vmatpush.bf16.msra.mxu0 %v767
    %962 = vmatmul.bf16.gmra.mxu0 %v822
    %v963 = vpop.f32.mrf.mxu0
    %v964 = vadd.f32 0.0, %v963
    %v965 = vpop.f32.mrf.mxu0
    %966 = vdwg.mxu0
    %967 = vmatpush.bf16.msra.mxu0 0
    %968 = vmatpush.bf16.msra.mxu0 0
    %969 = vmatpush.bf16.msra.mxu0 0
    %970 = vmatpush.bf16.msra.mxu0 0
    %971 = vmatpush.bf16.msra.mxu0 0
    %972 = vmatpush.bf16.msra.mxu0 0
    %973 = vmatpush.bf16.msra.mxu0 %v784
    %974 = vmatpush.bf16.msra.mxu0 %v768
    %975 = vmatmul.bf16.gmra.mxu0 %v822
    %v976 = vpop.f32.mrf.mxu0
    %v977 = vadd.f32 0.0, %v976
    %v978 = vpop.f32.mrf.mxu0
    %979 = vdwg.mxu0
    %980 = vmatpush.bf16.msra.mxu0 0
    %981 = vmatpush.bf16.msra.mxu0 0
    %982 = vmatpush.bf16.msra.mxu0 0
    %983 = vmatpush.bf16.msra.mxu0 0
    %984 = vmatpush.bf16.msra.mxu0 0
    %985 = vmatpush.bf16.msra.mxu0 0
    %986 = vmatpush.bf16.msra.mxu0 %v785
    %987 = vmatpush.bf16.msra.mxu0 %v769
    %988 = vmatmul.bf16.gmra.mxu0 %v822
    %v989 = vpop.f32.mrf.mxu0
    %v990 = vadd.f32 0.0, %v989
    %v991 = vpop.f32.mrf.mxu0
    %992 = vdwg.mxu0
    %993 = vmatpush.bf16.msra.mxu0 0
    %994 = vmatpush.bf16.msra.mxu0 0
    %995 = vmatpush.bf16.msra.mxu0 0
    %996 = vmatpush.bf16.msra.mxu0 0
    %997 = vmatpush.bf16.msra.mxu0 0
    %998 = vmatpush.bf16.msra.mxu0 0
    %999 = vmatpush.bf16.msra.mxu0 %v786
    %1000 = vmatpush.bf16.msra.mxu0 %v770
    %1001 = vmatmul.bf16.gmra.mxu0 %v822
    %v1002 = vpop.f32.mrf.mxu0
    %v1003 = vadd.f32 0.0, %v1002
    %v1004 = vpop.f32.mrf.mxu0
    %1005 = vdwg.mxu0
    %1006 = vmatpush.bf16.msra.mxu0 0
    %1007 = vmatpush.bf16.msra.mxu0 0
    %1008 = vmatpush.bf16.msra.mxu0 0
    %1009 = vmatpush.bf16.msra.mxu0 0
    %1010 = vmatpush.bf16.msra.mxu0 0
    %1011 = vmatpush.bf16.msra.mxu0 0
    %1012 = vmatpush.bf16.msra.mxu0 %v787
    %1013 = vmatpush.bf16.msra.mxu0 %v771
    %1014 = vmatmul.bf16.gmra.mxu0 %v822
    %v1015 = vpop.f32.mrf.mxu0
    %v1016 = vadd.f32 0.0, %v1015
    %v1017 = vpop.f32.mrf.mxu0
    %1018 = vdwg.mxu0
    %1019 = vmatpush.bf16.msra.mxu0 0
    %1020 = vmatpush.bf16.msra.mxu0 0
    %1021 = vmatpush.bf16.msra.mxu0 0
    %1022 = vmatpush.bf16.msra.mxu0 0
    %1023 = vmatpush.bf16.msra.mxu0 0
    %1024 = vmatpush.bf16.msra.mxu0 0
    %1025 = vmatpush.bf16.msra.mxu0 %v788
    %1026 = vmatpush.bf16.msra.mxu0 %v772
    %1027 = vmatmul.bf16.gmra.mxu0 %v822
    %v1028 = vpop.f32.mrf.mxu0
    %v1029 = vadd.f32 0.0, %v1028
    %v1030 = vpop.f32.mrf.mxu0
    %1031 = vdwg.mxu0
    %v1032 = vpack.c.bf16 %v847, %v834
    %v1033 = vpack.c.bf16 %v873, %v860
    %v1034 = vpack.c.bf16 %v899, %v886
    %v1035 = vpack.c.bf16 %v925, %v912
    %v1036 = vpack.c.bf16 %v951, %v938
    %v1037 = vpack.c.bf16 %v977, %v964
    %v1038 = vpack.c.bf16 %v1003, %v990
    %v1039 = vpack.c.bf16 %v1029, %v1016
    %v1040 = vld [vmem:[%s15] sm:$0xff]
    %v1041 = vld [vmem:[%s15 + $0x8] sm:$0xff]
    %1043 = vst [vmem:[#allocation1] ss:$9 sm:$0xff] %v1040
    %v1044 = vld [vmem:[#allocation1] sm:$0xff]
    %v1045 = vld [vmem:[#allocation1 + $0x9] sm:$0xff]
    %v1046 = vld [vmem:[#allocation1 + $0x12] sm:$0xff]
    %v1047 = vld [vmem:[#allocation1 + $0x1b] sm:$0xff]
    %v1048 = vld [vmem:[#allocation1 + $0x24] sm:$0xff]
    %v1049 = vld [vmem:[#allocation1 + $0x2d] sm:$0xff]
    %v1050 = vld [vmem:[#allocation1 + $0x36] sm:$0xff]
    %v1051 = vld [vmem:[#allocation1 + $0x3f] sm:$0xff]
    %1053 = vst [vmem:[#allocation1] ss:$9 sm:$0xff] %v1041
    %v1054 = vld [vmem:[#allocation1] sm:$0xff]
    %v1055 = vld [vmem:[#allocation1 + $0x9] sm:$0xff]
    %v1056 = vld [vmem:[#allocation1 + $0x12] sm:$0xff]
    %v1057 = vld [vmem:[#allocation1 + $0x1b] sm:$0xff]
    %v1058 = vld [vmem:[#allocation1 + $0x24] sm:$0xff]
    %v1059 = vld [vmem:[#allocation1 + $0x2d] sm:$0xff]
    %v1060 = vld [vmem:[#allocation1 + $0x36] sm:$0xff]
    %v1061 = vld [vmem:[#allocation1 + $0x3f] sm:$0xff]
    %v1062 = vpack.i.b16 %v1044, %v1044
    %v1064 = vperm.slane %v1062, 0
    %v1065 = vpack.i.b16 %v1045, %v1045
    %v1067 = vperm.slane %v1065, 0
    %v1068 = vpack.i.b16 %v1046, %v1046
    %v1070 = vperm.slane %v1068, 0
    %v1071 = vpack.i.b16 %v1047, %v1047
    %v1073 = vperm.slane %v1071, 0
    %v1074 = vpack.i.b16 %v1048, %v1048
    %v1076 = vperm.slane %v1074, 0
    %v1077 = vpack.i.b16 %v1049, %v1049
    %v1079 = vperm.slane %v1077, 0
    %v1080 = vpack.i.b16 %v1050, %v1050
    %v1082 = vperm.slane %v1080, 0
    %v1083 = vpack.i.b16 %v1051, %v1051
    %v1085 = vperm.slane %v1083, 0
    %v1086 = vpack.i.b16 %v1054, %v1054
    %v1088 = vperm.slane %v1086, 0
    %v1089 = vpack.i.b16 %v1055, %v1055
    %v1091 = vperm.slane %v1089, 0
    %v1092 = vpack.i.b16 %v1056, %v1056
    %v1094 = vperm.slane %v1092, 0
    %v1095 = vpack.i.b16 %v1057, %v1057
    %v1097 = vperm.slane %v1095, 0
    %v1098 = vpack.i.b16 %v1058, %v1058
    %v1100 = vperm.slane %v1098, 0
    %v1101 = vpack.i.b16 %v1059, %v1059
    %v1103 = vperm.slane %v1101, 0
    %v1104 = vpack.i.b16 %v1060, %v1060
    %v1106 = vperm.slane %v1104, 0
    %v1107 = vpack.i.b16 %v1061, %v1061
    %v1109 = vperm.slane %v1107, 0
    %v1110 = vunpack.c.l.bf16 %v1032
    %v1111 = vunpack.c.h.bf16 %v1032
    %v1112 = vunpack.c.l.bf16 %v1033
    %v1113 = vunpack.c.h.bf16 %v1033
    %v1114 = vunpack.c.l.bf16 %v1034
    %v1115 = vunpack.c.h.bf16 %v1034
    %v1116 = vunpack.c.l.bf16 %v1035
    %v1117 = vunpack.c.h.bf16 %v1035
    %v1118 = vunpack.c.l.bf16 %v1036
    %v1119 = vunpack.c.h.bf16 %v1036
    %v1120 = vunpack.c.l.bf16 %v1037
    %v1121 = vunpack.c.h.bf16 %v1037
    %v1122 = vunpack.c.l.bf16 %v1038
    %v1123 = vunpack.c.h.bf16 %v1038
    %v1124 = vunpack.c.l.bf16 %v1039
    %v1125 = vunpack.c.h.bf16 %v1039
    %v1126 = vunpack.c.l.bf16 %v1064
    %v1127 = vunpack.c.l.bf16 %v1067
    %v1128 = vunpack.c.l.bf16 %v1070
    %v1129 = vunpack.c.l.bf16 %v1073
    %v1130 = vunpack.c.l.bf16 %v1076
    %v1131 = vunpack.c.l.bf16 %v1079
    %v1132 = vunpack.c.l.bf16 %v1082
    %v1133 = vunpack.c.l.bf16 %v1085
    %v1134 = vunpack.c.l.bf16 %v1088
    %v1135 = vunpack.c.l.bf16 %v1091
    %v1136 = vunpack.c.l.bf16 %v1094
    %v1137 = vunpack.c.l.bf16 %v1097
    %v1138 = vunpack.c.l.bf16 %v1100
    %v1139 = vunpack.c.l.bf16 %v1103
    %v1140 = vunpack.c.l.bf16 %v1106
    %v1141 = vunpack.c.l.bf16 %v1109
    %v1142 = vadd.f32 %v1110, %v1126
    %v1143 = vadd.f32 %v1111, %v1127
    %v1144 = vadd.f32 %v1112, %v1128
    %v1145 = vadd.f32 %v1113, %v1129
    %v1146 = vadd.f32 %v1114, %v1130
    %v1147 = vadd.f32 %v1115, %v1131
    %v1148 = vadd.f32 %v1116, %v1132
    %v1149 = vadd.f32 %v1117, %v1133
    %v1150 = vadd.f32 %v1118, %v1134
    %v1151 = vadd.f32 %v1119, %v1135
    %v1152 = vadd.f32 %v1120, %v1136
    %v1153 = vadd.f32 %v1121, %v1137
    %v1154 = vadd.f32 %v1122, %v1138
    %v1155 = vadd.f32 %v1123, %v1139
    %v1156 = vadd.f32 %v1124, %v1140
    %v1157 = vadd.f32 %v1125, %v1141
    %v1158 = vpack.c.bf16 %v1143, %v1142
    %v1159 = vpack.c.bf16 %v1145, %v1144
    %v1160 = vpack.c.bf16 %v1147, %v1146
    %v1161 = vpack.c.bf16 %v1149, %v1148
    %v1162 = vpack.c.bf16 %v1151, %v1150
    %v1163 = vpack.c.bf16 %v1153, %v1152
    %v1164 = vpack.c.bf16 %v1155, %v1154
    %v1165 = vpack.c.bf16 %v1157, %v1156
    %v1166 = vunpack.c.l.bf16 %v1158
    %v1167 = vunpack.c.h.bf16 %v1158
    %v1168 = vunpack.c.l.bf16 %v1159
    %v1169 = vunpack.c.h.bf16 %v1159
    %v1170 = vunpack.c.l.bf16 %v1160
    %v1171 = vunpack.c.h.bf16 %v1160
    %v1172 = vunpack.c.l.bf16 %v1161
    %v1173 = vunpack.c.h.bf16 %v1161
    %v1174 = vunpack.c.l.bf16 %v1162
    %v1175 = vunpack.c.h.bf16 %v1162
    %v1176 = vunpack.c.l.bf16 %v1163
    %v1177 = vunpack.c.h.bf16 %v1163
    %v1178 = vunpack.c.l.bf16 %v1164
    %v1179 = vunpack.c.h.bf16 %v1164
    %v1180 = vunpack.c.l.bf16 %v1165
    %v1181 = vunpack.c.h.bf16 %v1165
    %v1182 = vmax.f32 %v1166, 0.0
    %v1183 = vmax.f32 %v1167, 0.0
    %v1184 = vmax.f32 %v1168, 0.0
    %v1185 = vmax.f32 %v1169, 0.0
    %v1186 = vmax.f32 %v1170, 0.0
    %v1187 = vmax.f32 %v1171, 0.0
    %v1188 = vmax.f32 %v1172, 0.0
    %v1189 = vmax.f32 %v1173, 0.0
    %v1190 = vmax.f32 %v1174, 0.0
    %v1191 = vmax.f32 %v1175, 0.0
    %v1192 = vmax.f32 %v1176, 0.0
    %v1193 = vmax.f32 %v1177, 0.0
    %v1194 = vmax.f32 %v1178, 0.0
    %v1195 = vmax.f32 %v1179, 0.0
    %v1196 = vmax.f32 %v1180, 0.0
    %v1197 = vmax.f32 %v1181, 0.0
    %v1198 = vpack.c.bf16 %v1182, %v1182
    %v1199 = vpack.c.bf16 %v1183, %v1183
    %v1200 = vpack.c.bf16 %v1184, %v1184
    %v1201 = vpack.c.bf16 %v1185, %v1185
    %v1202 = vpack.c.bf16 %v1186, %v1186
    %v1203 = vpack.c.bf16 %v1187, %v1187
    %v1204 = vpack.c.bf16 %v1188, %v1188
    %v1205 = vpack.c.bf16 %v1189, %v1189
    %v1206 = vpack.c.bf16 %v1190, %v1190
    %v1207 = vpack.c.bf16 %v1191, %v1191
    %v1208 = vpack.c.bf16 %v1192, %v1192
    %v1209 = vpack.c.bf16 %v1193, %v1193
    %v1210 = vpack.c.bf16 %v1194, %v1194
    %v1211 = vpack.c.bf16 %v1195, %v1195
    %v1212 = vpack.c.bf16 %v1196, %v1196
    %v1213 = vpack.c.bf16 %v1197, %v1197
    %v1214 = vld [vmem:[%s16] sm:$0xf]
    %v1215 = vld [vmem:[%s16 + $0x4] sm:$0xf]
    %v1216 = vld [vmem:[%s16 + $0x8] sm:$0xf]
    %v1217 = vld [vmem:[%s16 + $0xc] sm:$0xf]
    %v1218 = vld [vmem:[%s16 + $0x10] sm:$0xf]
    %v1219 = vld [vmem:[%s16 + $0x14] sm:$0xf]
    %v1220 = vld [vmem:[%s16 + $0x18] sm:$0xf]
    %v1221 = vld [vmem:[%s16 + $0x1c] sm:$0xf]
    %v1222 = vld [vmem:[%s16 + $0x20] sm:$0xf]
    %v1223 = vld [vmem:[%s16 + $0x24] sm:$0xf]
    %v1224 = vld [vmem:[%s16 + $0x28] sm:$0xf]
    %v1225 = vld [vmem:[%s16 + $0x2c] sm:$0xf]
    %v1226 = vld [vmem:[%s16 + $0x30] sm:$0xf]
    %v1227 = vld [vmem:[%s16 + $0x34] sm:$0xf]
    %v1228 = vld [vmem:[%s16 + $0x38] sm:$0xf]
    %v1229 = vld [vmem:[%s16 + $0x3c] sm:$0xf]
    %v1230 = vld [vmem:[%s16 + $0x40] sm:$0xf]
    %v1231 = vld [vmem:[%s16 + $0x44] sm:$0xf]
    %v1232 = vld [vmem:[%s16 + $0x48] sm:$0xf]
    %v1233 = vld [vmem:[%s16 + $0x4c] sm:$0xf]
    %v1234 = vld [vmem:[%s16 + $0x50] sm:$0xf]
    %v1235 = vld [vmem:[%s16 + $0x54] sm:$0xf]
    %v1236 = vld [vmem:[%s16 + $0x58] sm:$0xf]
    %v1237 = vld [vmem:[%s16 + $0x5c] sm:$0xf]
    %v1238 = vld [vmem:[%s16 + $0x60] sm:$0xf]
    %v1239 = vld [vmem:[%s16 + $0x64] sm:$0xf]
    %v1240 = vld [vmem:[%s16 + $0x68] sm:$0xf]
    %v1241 = vld [vmem:[%s16 + $0x6c] sm:$0xf]
    %v1242 = vld [vmem:[%s16 + $0x70] sm:$0xf]
    %v1243 = vld [vmem:[%s16 + $0x74] sm:$0xf]
    %v1244 = vld [vmem:[%s16 + $0x78] sm:$0xf]
    %v1245 = vld [vmem:[%s16 + $0x7c] sm:$0xf]
    %v1246 = vld [vmem:[%s16 + $0x80] sm:$0xf]
    %v1247 = vld [vmem:[%s16 + $0x84] sm:$0xf]
    %v1248 = vld [vmem:[%s16 + $0x88] sm:$0xf]
    %v1249 = vld [vmem:[%s16 + $0x8c] sm:$0xf]
    %v1250 = vld [vmem:[%s16 + $0x90] sm:$0xf]
    %v1251 = vld [vmem:[%s16 + $0x94] sm:$0xf]
    %v1252 = vld [vmem:[%s16 + $0x98] sm:$0xf]
    %v1253 = vld [vmem:[%s16 + $0x9c] sm:$0xf]
    %v1254 = vld [vmem:[%s16 + $0xa0] sm:$0xf]
    %v1255 = vld [vmem:[%s16 + $0xa4] sm:$0xf]
    %v1256 = vld [vmem:[%s16 + $0xa8] sm:$0xf]
    %v1257 = vld [vmem:[%s16 + $0xac] sm:$0xf]
    %v1258 = vld [vmem:[%s16 + $0xb0] sm:$0xf]
    %v1259 = vld [vmem:[%s16 + $0xb4] sm:$0xf]
    %v1260 = vld [vmem:[%s16 + $0xb8] sm:$0xf]
    %v1261 = vld [vmem:[%s16 + $0xbc] sm:$0xf]
    %v1262 = vld [vmem:[%s16 + $0xc0] sm:$0xf]
    %v1263 = vld [vmem:[%s16 + $0xc4] sm:$0xf]
    %v1264 = vld [vmem:[%s16 + $0xc8] sm:$0xf]
    %v1265 = vld [vmem:[%s16 + $0xcc] sm:$0xf]
    %v1266 = vld [vmem:[%s16 + $0xd0] sm:$0xf]
    %v1267 = vld [vmem:[%s16 + $0xd4] sm:$0xf]
    %v1268 = vld [vmem:[%s16 + $0xd8] sm:$0xf]
    %v1269 = vld [vmem:[%s16 + $0xdc] sm:$0xf]
    %v1270 = vld [vmem:[%s16 + $0xe0] sm:$0xf]
    %v1271 = vld [vmem:[%s16 + $0xe4] sm:$0xf]
    %v1272 = vld [vmem:[%s16 + $0xe8] sm:$0xf]
    %v1273 = vld [vmem:[%s16 + $0xec] sm:$0xf]
    %v1274 = vld [vmem:[%s16 + $0xf0] sm:$0xf]
    %v1275 = vld [vmem:[%s16 + $0xf4] sm:$0xf]
    %v1276 = vld [vmem:[%s16 + $0xf8] sm:$0xf]
    %v1277 = vld [vmem:[%s16 + $0xfc] sm:$0xf]
    %v1278 = vld [vmem:[%s16 + $0x100] sm:$0xf]
    %v1279 = vld [vmem:[%s16 + $0x104] sm:$0xf]
    %v1280 = vld [vmem:[%s16 + $0x108] sm:$0xf]
    %v1281 = vld [vmem:[%s16 + $0x10c] sm:$0xf]
    %v1282 = vld [vmem:[%s16 + $0x110] sm:$0xf]
    %v1283 = vld [vmem:[%s16 + $0x114] sm:$0xf]
    %v1284 = vld [vmem:[%s16 + $0x118] sm:$0xf]
    %v1285 = vld [vmem:[%s16 + $0x11c] sm:$0xf]
    %v1286 = vld [vmem:[%s16 + $0x120] sm:$0xf]
    %v1287 = vld [vmem:[%s16 + $0x124] sm:$0xf]
    %v1288 = vld [vmem:[%s16 + $0x128] sm:$0xf]
    %v1289 = vld [vmem:[%s16 + $0x12c] sm:$0xf]
    %v1290 = vld [vmem:[%s16 + $0x130] sm:$0xf]
    %v1291 = vld [vmem:[%s16 + $0x134] sm:$0xf]
    %v1292 = vld [vmem:[%s16 + $0x138] sm:$0xf]
    %v1293 = vld [vmem:[%s16 + $0x13c] sm:$0xf]
    %v1294 = vld [vmem:[%s16 + $0x140] sm:$0xf]
    %v1295 = vld [vmem:[%s16 + $0x144] sm:$0xf]
    %v1296 = vld [vmem:[%s16 + $0x148] sm:$0xf]
    %v1297 = vld [vmem:[%s16 + $0x14c] sm:$0xf]
    %v1298 = vld [vmem:[%s16 + $0x150] sm:$0xf]
    %v1299 = vld [vmem:[%s16 + $0x154] sm:$0xf]
    %v1300 = vld [vmem:[%s16 + $0x158] sm:$0xf]
    %v1301 = vld [vmem:[%s16 + $0x15c] sm:$0xf]
    %v1302 = vld [vmem:[%s16 + $0x160] sm:$0xf]
    %v1303 = vld [vmem:[%s16 + $0x164] sm:$0xf]
    %v1304 = vld [vmem:[%s16 + $0x168] sm:$0xf]
    %v1305 = vld [vmem:[%s16 + $0x16c] sm:$0xf]
    %v1306 = vld [vmem:[%s16 + $0x170] sm:$0xf]
    %v1307 = vld [vmem:[%s16 + $0x174] sm:$0xf]
    %v1308 = vld [vmem:[%s16 + $0x178] sm:$0xf]
    %v1309 = vld [vmem:[%s16 + $0x17c] sm:$0xf]
    %v1310 = vld [vmem:[%s16 + $0x180] sm:$0xf]
    %v1311 = vld [vmem:[%s16 + $0x184] sm:$0xf]
    %v1312 = vld [vmem:[%s16 + $0x188] sm:$0xf]
    %v1313 = vld [vmem:[%s16 + $0x18c] sm:$0xf]
    %v1314 = vld [vmem:[%s16 + $0x190] sm:$0xf]
    %v1315 = vld [vmem:[%s16 + $0x194] sm:$0xf]
    %v1316 = vld [vmem:[%s16 + $0x198] sm:$0xf]
    %v1317 = vld [vmem:[%s16 + $0x19c] sm:$0xf]
    %v1318 = vld [vmem:[%s16 + $0x1a0] sm:$0xf]
    %v1319 = vld [vmem:[%s16 + $0x1a4] sm:$0xf]
    %v1320 = vld [vmem:[%s16 + $0x1a8] sm:$0xf]
    %v1321 = vld [vmem:[%s16 + $0x1ac] sm:$0xf]
    %v1322 = vld [vmem:[%s16 + $0x1b0] sm:$0xf]
    %v1323 = vld [vmem:[%s16 + $0x1b4] sm:$0xf]
    %v1324 = vld [vmem:[%s16 + $0x1b8] sm:$0xf]
    %v1325 = vld [vmem:[%s16 + $0x1bc] sm:$0xf]
    %v1326 = vld [vmem:[%s16 + $0x1c0] sm:$0xf]
    %v1327 = vld [vmem:[%s16 + $0x1c4] sm:$0xf]
    %v1328 = vld [vmem:[%s16 + $0x1c8] sm:$0xf]
    %v1329 = vld [vmem:[%s16 + $0x1cc] sm:$0xf]
    %v1330 = vld [vmem:[%s16 + $0x1d0] sm:$0xf]
    %v1331 = vld [vmem:[%s16 + $0x1d4] sm:$0xf]
    %v1332 = vld [vmem:[%s16 + $0x1d8] sm:$0xf]
    %v1333 = vld [vmem:[%s16 + $0x1dc] sm:$0xf]
    %v1334 = vld [vmem:[%s16 + $0x1e0] sm:$0xf]
    %v1335 = vld [vmem:[%s16 + $0x1e4] sm:$0xf]
    %v1336 = vld [vmem:[%s16 + $0x1e8] sm:$0xf]
    %v1337 = vld [vmem:[%s16 + $0x1ec] sm:$0xf]
    %v1338 = vld [vmem:[%s16 + $0x1f0] sm:$0xf]
    %v1339 = vld [vmem:[%s16 + $0x1f4] sm:$0xf]
    %v1340 = vld [vmem:[%s16 + $0x1f8] sm:$0xf]
    %v1341 = vld [vmem:[%s16 + $0x1fc] sm:$0xf]
    %v1342 = vld [vmem:[%s16 + $0x200] sm:$0xf]
    %v1343 = vld [vmem:[%s16 + $0x204] sm:$0xf]
    %v1344 = vld [vmem:[%s16 + $0x208] sm:$0xf]
    %v1345 = vld [vmem:[%s16 + $0x20c] sm:$0xf]
    %v1346 = vld [vmem:[%s16 + $0x210] sm:$0xf]
    %v1347 = vld [vmem:[%s16 + $0x214] sm:$0xf]
    %v1348 = vld [vmem:[%s16 + $0x218] sm:$0xf]
    %v1349 = vld [vmem:[%s16 + $0x21c] sm:$0xf]
    %v1350 = vld [vmem:[%s16 + $0x220] sm:$0xf]
    %v1351 = vld [vmem:[%s16 + $0x224] sm:$0xf]
    %v1352 = vld [vmem:[%s16 + $0x228] sm:$0xf]
    %v1353 = vld [vmem:[%s16 + $0x22c] sm:$0xf]
    %v1354 = vld [vmem:[%s16 + $0x230] sm:$0xf]
    %v1355 = vld [vmem:[%s16 + $0x234] sm:$0xf]
    %v1356 = vld [vmem:[%s16 + $0x238] sm:$0xf]
    %v1357 = vld [vmem:[%s16 + $0x23c] sm:$0xf]
    %v1358 = vld [vmem:[%s16 + $0x240] sm:$0xf]
    %v1359 = vld [vmem:[%s16 + $0x244] sm:$0xf]
    %v1360 = vld [vmem:[%s16 + $0x248] sm:$0xf]
    %v1361 = vld [vmem:[%s16 + $0x24c] sm:$0xf]
    %v1362 = vld [vmem:[%s16 + $0x250] sm:$0xf]
    %v1363 = vld [vmem:[%s16 + $0x254] sm:$0xf]
    %v1364 = vld [vmem:[%s16 + $0x258] sm:$0xf]
    %v1365 = vld [vmem:[%s16 + $0x25c] sm:$0xf]
    %v1366 = vld [vmem:[%s16 + $0x260] sm:$0xf]
    %v1367 = vld [vmem:[%s16 + $0x264] sm:$0xf]
    %v1368 = vld [vmem:[%s16 + $0x268] sm:$0xf]
    %v1369 = vld [vmem:[%s16 + $0x26c] sm:$0xf]
    %v1370 = vld [vmem:[%s16 + $0x270] sm:$0xf]
    %v1371 = vld [vmem:[%s16 + $0x274] sm:$0xf]
    %v1372 = vld [vmem:[%s16 + $0x278] sm:$0xf]
    %v1373 = vld [vmem:[%s16 + $0x27c] sm:$0xf]
    %v1374 = vld [vmem:[%s16 + $0x280] sm:$0xf]
    %v1375 = vld [vmem:[%s16 + $0x284] sm:$0xf]
    %v1376 = vld [vmem:[%s16 + $0x288] sm:$0xf]
    %v1377 = vld [vmem:[%s16 + $0x28c] sm:$0xf]
    %v1378 = vld [vmem:[%s16 + $0x290] sm:$0xf]
    %v1379 = vld [vmem:[%s16 + $0x294] sm:$0xf]
    %v1380 = vld [vmem:[%s16 + $0x298] sm:$0xf]
    %v1381 = vld [vmem:[%s16 + $0x29c] sm:$0xf]
    %v1382 = vld [vmem:[%s16 + $0x2a0] sm:$0xf]
    %v1383 = vld [vmem:[%s16 + $0x2a4] sm:$0xf]
    %v1384 = vld [vmem:[%s16 + $0x2a8] sm:$0xf]
    %v1385 = vld [vmem:[%s16 + $0x2ac] sm:$0xf]
    %v1386 = vld [vmem:[%s16 + $0x2b0] sm:$0xf]
    %v1387 = vld [vmem:[%s16 + $0x2b4] sm:$0xf]
    %v1388 = vld [vmem:[%s16 + $0x2b8] sm:$0xf]
    %v1389 = vld [vmem:[%s16 + $0x2bc] sm:$0xf]
    %v1390 = vld [vmem:[%s16 + $0x2c0] sm:$0xf]
    %v1391 = vld [vmem:[%s16 + $0x2c4] sm:$0xf]
    %v1392 = vld [vmem:[%s16 + $0x2c8] sm:$0xf]
    %v1393 = vld [vmem:[%s16 + $0x2cc] sm:$0xf]
    %v1394 = vld [vmem:[%s16 + $0x2d0] sm:$0xf]
    %v1395 = vld [vmem:[%s16 + $0x2d4] sm:$0xf]
    %v1396 = vld [vmem:[%s16 + $0x2d8] sm:$0xf]
    %v1397 = vld [vmem:[%s16 + $0x2dc] sm:$0xf]
    %v1398 = vld [vmem:[%s16 + $0x2e0] sm:$0xf]
    %v1399 = vld [vmem:[%s16 + $0x2e4] sm:$0xf]
    %v1400 = vld [vmem:[%s16 + $0x2e8] sm:$0xf]
    %v1401 = vld [vmem:[%s16 + $0x2ec] sm:$0xf]
    %v1402 = vld [vmem:[%s16 + $0x2f0] sm:$0xf]
    %v1403 = vld [vmem:[%s16 + $0x2f4] sm:$0xf]
    %v1404 = vld [vmem:[%s16 + $0x2f8] sm:$0xf]
    %v1405 = vld [vmem:[%s16 + $0x2fc] sm:$0xf]
    %v1406 = vld [vmem:[%s16 + $0x300] sm:$0xf]
    %v1407 = vld [vmem:[%s16 + $0x304] sm:$0xf]
    %v1408 = vld [vmem:[%s16 + $0x308] sm:$0xf]
    %v1409 = vld [vmem:[%s16 + $0x30c] sm:$0xf]
    %v1410 = vld [vmem:[%s16 + $0x310] sm:$0xf]
    %v1411 = vld [vmem:[%s16 + $0x314] sm:$0xf]
    %v1412 = vld [vmem:[%s16 + $0x318] sm:$0xf]
    %v1413 = vld [vmem:[%s16 + $0x31c] sm:$0xf]
    %v1414 = vld [vmem:[%s16 + $0x320] sm:$0xf]
    %v1415 = vld [vmem:[%s16 + $0x324] sm:$0xf]
    %v1416 = vld [vmem:[%s16 + $0x328] sm:$0xf]
    %v1417 = vld [vmem:[%s16 + $0x32c] sm:$0xf]
    %v1418 = vld [vmem:[%s16 + $0x330] sm:$0xf]
    %v1419 = vld [vmem:[%s16 + $0x334] sm:$0xf]
    %v1420 = vld [vmem:[%s16 + $0x338] sm:$0xf]
    %v1421 = vld [vmem:[%s16 + $0x33c] sm:$0xf]
    %v1422 = vld [vmem:[%s16 + $0x340] sm:$0xf]
    %v1423 = vld [vmem:[%s16 + $0x344] sm:$0xf]
    %v1424 = vld [vmem:[%s16 + $0x348] sm:$0xf]
    %v1425 = vld [vmem:[%s16 + $0x34c] sm:$0xf]
    %v1426 = vld [vmem:[%s16 + $0x350] sm:$0xf]
    %v1427 = vld [vmem:[%s16 + $0x354] sm:$0xf]
    %v1428 = vld [vmem:[%s16 + $0x358] sm:$0xf]
    %v1429 = vld [vmem:[%s16 + $0x35c] sm:$0xf]
    %v1430 = vld [vmem:[%s16 + $0x360] sm:$0xf]
    %v1431 = vld [vmem:[%s16 + $0x364] sm:$0xf]
    %v1432 = vld [vmem:[%s16 + $0x368] sm:$0xf]
    %v1433 = vld [vmem:[%s16 + $0x36c] sm:$0xf]
    %v1434 = vld [vmem:[%s16 + $0x370] sm:$0xf]
    %v1435 = vld [vmem:[%s16 + $0x374] sm:$0xf]
    %v1436 = vld [vmem:[%s16 + $0x378] sm:$0xf]
    %v1437 = vld [vmem:[%s16 + $0x37c] sm:$0xf]
    %v1438 = vld [vmem:[%s16 + $0x380] sm:$0xf]
    %v1439 = vld [vmem:[%s16 + $0x384] sm:$0xf]
    %v1440 = vld [vmem:[%s16 + $0x388] sm:$0xf]
    %v1441 = vld [vmem:[%s16 + $0x38c] sm:$0xf]
    %v1442 = vld [vmem:[%s16 + $0x390] sm:$0xf]
    %v1443 = vld [vmem:[%s16 + $0x394] sm:$0xf]
    %v1444 = vld [vmem:[%s16 + $0x398] sm:$0xf]
    %v1445 = vld [vmem:[%s16 + $0x39c] sm:$0xf]
    %v1446 = vld [vmem:[%s16 + $0x3a0] sm:$0xf]
    %v1447 = vld [vmem:[%s16 + $0x3a4] sm:$0xf]
    %v1448 = vld [vmem:[%s16 + $0x3a8] sm:$0xf]
    %v1449 = vld [vmem:[%s16 + $0x3ac] sm:$0xf]
    %v1450 = vld [vmem:[%s16 + $0x3b0] sm:$0xf]
    %v1451 = vld [vmem:[%s16 + $0x3b4] sm:$0xf]
    %v1452 = vld [vmem:[%s16 + $0x3b8] sm:$0xf]
    %v1453 = vld [vmem:[%s16 + $0x3bc] sm:$0xf]
    %v1454 = vld [vmem:[%s16 + $0x3c0] sm:$0xf]
    %v1455 = vld [vmem:[%s16 + $0x3c4] sm:$0xf]
    %v1456 = vld [vmem:[%s16 + $0x3c8] sm:$0xf]
    %v1457 = vld [vmem:[%s16 + $0x3cc] sm:$0xf]
    %v1458 = vld [vmem:[%s16 + $0x3d0] sm:$0xf]
    %v1459 = vld [vmem:[%s16 + $0x3d4] sm:$0xf]
    %v1460 = vld [vmem:[%s16 + $0x3d8] sm:$0xf]
    %v1461 = vld [vmem:[%s16 + $0x3dc] sm:$0xf]
    %v1462 = vld [vmem:[%s16 + $0x3e0] sm:$0xf]
    %v1463 = vld [vmem:[%s16 + $0x3e4] sm:$0xf]
    %v1464 = vld [vmem:[%s16 + $0x3e8] sm:$0xf]
    %v1465 = vld [vmem:[%s16 + $0x3ec] sm:$0xf]
    %v1466 = vld [vmem:[%s16 + $0x3f0] sm:$0xf]
    %v1467 = vld [vmem:[%s16 + $0x3f4] sm:$0xf]
    %v1468 = vld [vmem:[%s16 + $0x3f8] sm:$0xf]
    %v1469 = vld [vmem:[%s16 + $0x3fc] sm:$0xf]
    %v1470 = vld [vmem:[%s17] sm:$0x1]
    %v1472 = vperm.slane %v1470, 0
    %v1730 = vunpack.c.l.b16 %v1214
    %v1731 = vunpack.c.l.b16 %v1215
    %v1732 = vunpack.c.l.b16 %v1216
    %v1733 = vunpack.c.l.b16 %v1217
    %v1734 = vunpack.c.l.b16 %v1218
    %v1735 = vunpack.c.l.b16 %v1219
    %v1736 = vunpack.c.l.b16 %v1220
    %v1737 = vunpack.c.l.b16 %v1221
    %v1738 = vunpack.c.l.b16 %v1222
    %v1739 = vunpack.c.l.b16 %v1223
    %v1740 = vunpack.c.l.b16 %v1224
    %v1741 = vunpack.c.l.b16 %v1225
    %v1742 = vunpack.c.l.b16 %v1226
    %v1743 = vunpack.c.l.b16 %v1227
    %v1744 = vunpack.c.l.b16 %v1228
    %v1745 = vunpack.c.l.b16 %v1229
    %v1746 = vunpack.c.l.b16 %v1230
    %v1747 = vunpack.c.l.b16 %v1231
    %v1748 = vunpack.c.l.b16 %v1232
    %v1749 = vunpack.c.l.b16 %v1233
    %v1750 = vunpack.c.l.b16 %v1234
    %v1751 = vunpack.c.l.b16 %v1235
    %v1752 = vunpack.c.l.b16 %v1236
    %v1753 = vunpack.c.l.b16 %v1237
    %v1754 = vunpack.c.l.b16 %v1238
    %v1755 = vunpack.c.l.b16 %v1239
    %v1756 = vunpack.c.l.b16 %v1240
    %v1757 = vunpack.c.l.b16 %v1241
    %v1758 = vunpack.c.l.b16 %v1242
    %v1759 = vunpack.c.l.b16 %v1243
    %v1760 = vunpack.c.l.b16 %v1244
    %v1761 = vunpack.c.l.b16 %v1245
    %v1762 = vunpack.c.l.b16 %v1246
    %v1763 = vunpack.c.l.b16 %v1247
    %v1764 = vunpack.c.l.b16 %v1248
    %v1765 = vunpack.c.l.b16 %v1249
    %v1766 = vunpack.c.l.b16 %v1250
    %v1767 = vunpack.c.l.b16 %v1251
    %v1768 = vunpack.c.l.b16 %v1252
    %v1769 = vunpack.c.l.b16 %v1253
    %v1770 = vunpack.c.l.b16 %v1254
    %v1771 = vunpack.c.l.b16 %v1255
    %v1772 = vunpack.c.l.b16 %v1256
    %v1773 = vunpack.c.l.b16 %v1257
    %v1774 = vunpack.c.l.b16 %v1258
    %v1775 = vunpack.c.l.b16 %v1259
    %v1776 = vunpack.c.l.b16 %v1260
    %v1777 = vunpack.c.l.b16 %v1261
    %v1778 = vunpack.c.l.b16 %v1262
    %v1779 = vunpack.c.l.b16 %v1263
    %v1780 = vunpack.c.l.b16 %v1264
    %v1781 = vunpack.c.l.b16 %v1265
    %v1782 = vunpack.c.l.b16 %v1266
    %v1783 = vunpack.c.l.b16 %v1267
    %v1784 = vunpack.c.l.b16 %v1268
    %v1785 = vunpack.c.l.b16 %v1269
    %v1786 = vunpack.c.l.b16 %v1270
    %v1787 = vunpack.c.l.b16 %v1271
    %v1788 = vunpack.c.l.b16 %v1272
    %v1789 = vunpack.c.l.b16 %v1273
    %v1790 = vunpack.c.l.b16 %v1274
    %v1791 = vunpack.c.l.b16 %v1275
    %v1792 = vunpack.c.l.b16 %v1276
    %v1793 = vunpack.c.l.b16 %v1277
    %v1794 = vunpack.c.l.b16 %v1278
    %v1795 = vunpack.c.l.b16 %v1279
    %v1796 = vunpack.c.l.b16 %v1280
    %v1797 = vunpack.c.l.b16 %v1281
    %v1798 = vunpack.c.l.b16 %v1282
    %v1799 = vunpack.c.l.b16 %v1283
    %v1800 = vunpack.c.l.b16 %v1284
    %v1801 = vunpack.c.l.b16 %v1285
    %v1802 = vunpack.c.l.b16 %v1286
    %v1803 = vunpack.c.l.b16 %v1287
    %v1804 = vunpack.c.l.b16 %v1288
    %v1805 = vunpack.c.l.b16 %v1289
    %v1806 = vunpack.c.l.b16 %v1290
    %v1807 = vunpack.c.l.b16 %v1291
    %v1808 = vunpack.c.l.b16 %v1292
    %v1809 = vunpack.c.l.b16 %v1293
    %v1810 = vunpack.c.l.b16 %v1294
    %v1811 = vunpack.c.l.b16 %v1295
    %v1812 = vunpack.c.l.b16 %v1296
    %v1813 = vunpack.c.l.b16 %v1297
    %v1814 = vunpack.c.l.b16 %v1298
    %v1815 = vunpack.c.l.b16 %v1299
    %v1816 = vunpack.c.l.b16 %v1300
    %v1817 = vunpack.c.l.b16 %v1301
    %v1818 = vunpack.c.l.b16 %v1302
    %v1819 = vunpack.c.l.b16 %v1303
    %v1820 = vunpack.c.l.b16 %v1304
    %v1821 = vunpack.c.l.b16 %v1305
    %v1822 = vunpack.c.l.b16 %v1306
    %v1823 = vunpack.c.l.b16 %v1307
    %v1824 = vunpack.c.l.b16 %v1308
    %v1825 = vunpack.c.l.b16 %v1309
    %v1826 = vunpack.c.l.b16 %v1310
    %v1827 = vunpack.c.l.b16 %v1311
    %v1828 = vunpack.c.l.b16 %v1312
    %v1829 = vunpack.c.l.b16 %v1313
    %v1830 = vunpack.c.l.b16 %v1314
    %v1831 = vunpack.c.l.b16 %v1315
    %v1832 = vunpack.c.l.b16 %v1316
    %v1833 = vunpack.c.l.b16 %v1317
    %v1834 = vunpack.c.l.b16 %v1318
    %v1835 = vunpack.c.l.b16 %v1319
    %v1836 = vunpack.c.l.b16 %v1320
    %v1837 = vunpack.c.l.b16 %v1321
    %v1838 = vunpack.c.l.b16 %v1322
    %v1839 = vunpack.c.l.b16 %v1323
    %v1840 = vunpack.c.l.b16 %v1324
    %v1841 = vunpack.c.l.b16 %v1325
    %v1842 = vunpack.c.l.b16 %v1326
    %v1843 = vunpack.c.l.b16 %v1327
    %v1844 = vunpack.c.l.b16 %v1328
    %v1845 = vunpack.c.l.b16 %v1329
    %v1846 = vunpack.c.l.b16 %v1330
    %v1847 = vunpack.c.l.b16 %v1331
    %v1848 = vunpack.c.l.b16 %v1332
    %v1849 = vunpack.c.l.b16 %v1333
    %v1850 = vunpack.c.l.b16 %v1334
    %v1851 = vunpack.c.l.b16 %v1335
    %v1852 = vunpack.c.l.b16 %v1336
    %v1853 = vunpack.c.l.b16 %v1337
    %v1854 = vunpack.c.l.b16 %v1338
    %v1855 = vunpack.c.l.b16 %v1339
    %v1856 = vunpack.c.l.b16 %v1340
    %v1857 = vunpack.c.l.b16 %v1341
    %v1858 = vunpack.c.l.b16 %v1342
    %v1859 = vunpack.c.l.b16 %v1343
    %v1860 = vunpack.c.l.b16 %v1344
    %v1861 = vunpack.c.l.b16 %v1345
    %v1862 = vunpack.c.l.b16 %v1346
    %v1863 = vunpack.c.l.b16 %v1347
    %v1864 = vunpack.c.l.b16 %v1348
    %v1865 = vunpack.c.l.b16 %v1349
    %v1866 = vunpack.c.l.b16 %v1350
    %v1867 = vunpack.c.l.b16 %v1351
    %v1868 = vunpack.c.l.b16 %v1352
    %v1869 = vunpack.c.l.b16 %v1353
    %v1870 = vunpack.c.l.b16 %v1354
    %v1871 = vunpack.c.l.b16 %v1355
    %v1872 = vunpack.c.l.b16 %v1356
    %v1873 = vunpack.c.l.b16 %v1357
    %v1874 = vunpack.c.l.b16 %v1358
    %v1875 = vunpack.c.l.b16 %v1359
    %v1876 = vunpack.c.l.b16 %v1360
    %v1877 = vunpack.c.l.b16 %v1361
    %v1878 = vunpack.c.l.b16 %v1362
    %v1879 = vunpack.c.l.b16 %v1363
    %v1880 = vunpack.c.l.b16 %v1364
    %v1881 = vunpack.c.l.b16 %v1365
    %v1882 = vunpack.c.l.b16 %v1366
    %v1883 = vunpack.c.l.b16 %v1367
    %v1884 = vunpack.c.l.b16 %v1368
    %v1885 = vunpack.c.l.b16 %v1369
    %v1886 = vunpack.c.l.b16 %v1370
    %v1887 = vunpack.c.l.b16 %v1371
    %v1888 = vunpack.c.l.b16 %v1372
    %v1889 = vunpack.c.l.b16 %v1373
    %v1890 = vunpack.c.l.b16 %v1374
    %v1891 = vunpack.c.l.b16 %v1375
    %v1892 = vunpack.c.l.b16 %v1376
    %v1893 = vunpack.c.l.b16 %v1377
    %v1894 = vunpack.c.l.b16 %v1378
    %v1895 = vunpack.c.l.b16 %v1379
    %v1896 = vunpack.c.l.b16 %v1380
    %v1897 = vunpack.c.l.b16 %v1381
    %v1898 = vunpack.c.l.b16 %v1382
    %v1899 = vunpack.c.l.b16 %v1383
    %v1900 = vunpack.c.l.b16 %v1384
    %v1901 = vunpack.c.l.b16 %v1385
    %v1902 = vunpack.c.l.b16 %v1386
    %v1903 = vunpack.c.l.b16 %v1387
    %v1904 = vunpack.c.l.b16 %v1388
    %v1905 = vunpack.c.l.b16 %v1389
    %v1906 = vunpack.c.l.b16 %v1390
    %v1907 = vunpack.c.l.b16 %v1391
    %v1908 = vunpack.c.l.b16 %v1392
    %v1909 = vunpack.c.l.b16 %v1393
    %v1910 = vunpack.c.l.b16 %v1394
    %v1911 = vunpack.c.l.b16 %v1395
    %v1912 = vunpack.c.l.b16 %v1396
    %v1913 = vunpack.c.l.b16 %v1397
    %v1914 = vunpack.c.l.b16 %v1398
    %v1915 = vunpack.c.l.b16 %v1399
    %v1916 = vunpack.c.l.b16 %v1400
    %v1917 = vunpack.c.l.b16 %v1401
    %v1918 = vunpack.c.l.b16 %v1402
    %v1919 = vunpack.c.l.b16 %v1403
    %v1920 = vunpack.c.l.b16 %v1404
    %v1921 = vunpack.c.l.b16 %v1405
    %v1922 = vunpack.c.l.b16 %v1406
    %v1923 = vunpack.c.l.b16 %v1407
    %v1924 = vunpack.c.l.b16 %v1408
    %v1925 = vunpack.c.l.b16 %v1409
    %v1926 = vunpack.c.l.b16 %v1410
    %v1927 = vunpack.c.l.b16 %v1411
    %v1928 = vunpack.c.l.b16 %v1412
    %v1929 = vunpack.c.l.b16 %v1413
    %v1930 = vunpack.c.l.b16 %v1414
    %v1931 = vunpack.c.l.b16 %v1415
    %v1932 = vunpack.c.l.b16 %v1416
    %v1933 = vunpack.c.l.b16 %v1417
    %v1934 = vunpack.c.l.b16 %v1418
    %v1935 = vunpack.c.l.b16 %v1419
    %v1936 = vunpack.c.l.b16 %v1420
    %v1937 = vunpack.c.l.b16 %v1421
    %v1938 = vunpack.c.l.b16 %v1422
    %v1939 = vunpack.c.l.b16 %v1423
    %v1940 = vunpack.c.l.b16 %v1424
    %v1941 = vunpack.c.l.b16 %v1425
    %v1942 = vunpack.c.l.b16 %v1426
    %v1943 = vunpack.c.l.b16 %v1427
    %v1944 = vunpack.c.l.b16 %v1428
    %v1945 = vunpack.c.l.b16 %v1429
    %v1946 = vunpack.c.l.b16 %v1430
    %v1947 = vunpack.c.l.b16 %v1431
    %v1948 = vunpack.c.l.b16 %v1432
    %v1949 = vunpack.c.l.b16 %v1433
    %v1950 = vunpack.c.l.b16 %v1434
    %v1951 = vunpack.c.l.b16 %v1435
    %v1952 = vunpack.c.l.b16 %v1436
    %v1953 = vunpack.c.l.b16 %v1437
    %v1954 = vunpack.c.l.b16 %v1438
    %v1955 = vunpack.c.l.b16 %v1439
    %v1956 = vunpack.c.l.b16 %v1440
    %v1957 = vunpack.c.l.b16 %v1441
    %v1958 = vunpack.c.l.b16 %v1442
    %v1959 = vunpack.c.l.b16 %v1443
    %v1960 = vunpack.c.l.b16 %v1444
    %v1961 = vunpack.c.l.b16 %v1445
    %v1962 = vunpack.c.l.b16 %v1446
    %v1963 = vunpack.c.l.b16 %v1447
    %v1964 = vunpack.c.l.b16 %v1448
    %v1965 = vunpack.c.l.b16 %v1449
    %v1966 = vunpack.c.l.b16 %v1450
    %v1967 = vunpack.c.l.b16 %v1451
    %v1968 = vunpack.c.l.b16 %v1452
    %v1969 = vunpack.c.l.b16 %v1453
    %v1970 = vunpack.c.l.b16 %v1454
    %v1971 = vunpack.c.l.b16 %v1455
    %v1972 = vunpack.c.l.b16 %v1456
    %v1973 = vunpack.c.l.b16 %v1457
    %v1974 = vunpack.c.l.b16 %v1458
    %v1975 = vunpack.c.l.b16 %v1459
    %v1976 = vunpack.c.l.b16 %v1460
    %v1977 = vunpack.c.l.b16 %v1461
    %v1978 = vunpack.c.l.b16 %v1462
    %v1979 = vunpack.c.l.b16 %v1463
    %v1980 = vunpack.c.l.b16 %v1464
    %v1981 = vunpack.c.l.b16 %v1465
    %v1982 = vunpack.c.l.b16 %v1466
    %v1983 = vunpack.c.l.b16 %v1467
    %v1984 = vunpack.c.l.b16 %v1468
    %v1985 = vunpack.c.l.b16 %v1469
    %v1986 = vpack.c.b16 %v1731, %v1730
    %v1987 = vpack.c.b16 %v1733, %v1732
    %v1988 = vpack.c.b16 %v1735, %v1734
    %v1989 = vpack.c.b16 %v1737, %v1736
    %v1990 = vpack.c.b16 %v1739, %v1738
    %v1991 = vpack.c.b16 %v1741, %v1740
    %v1992 = vpack.c.b16 %v1743, %v1742
    %v1993 = vpack.c.b16 %v1745, %v1744
    %v1994 = vpack.c.b16 %v1747, %v1746
    %v1995 = vpack.c.b16 %v1749, %v1748
    %v1996 = vpack.c.b16 %v1751, %v1750
    %v1997 = vpack.c.b16 %v1753, %v1752
    %v1998 = vpack.c.b16 %v1755, %v1754
    %v1999 = vpack.c.b16 %v1757, %v1756
    %v2000 = vpack.c.b16 %v1759, %v1758
    %v2001 = vpack.c.b16 %v1761, %v1760
    %v2002 = vpack.c.b16 %v1763, %v1762
    %v2003 = vpack.c.b16 %v1765, %v1764
    %v2004 = vpack.c.b16 %v1767, %v1766
    %v2005 = vpack.c.b16 %v1769, %v1768
    %v2006 = vpack.c.b16 %v1771, %v1770
    %v2007 = vpack.c.b16 %v1773, %v1772
    %v2008 = vpack.c.b16 %v1775, %v1774
    %v2009 = vpack.c.b16 %v1777, %v1776
    %v2010 = vpack.c.b16 %v1779, %v1778
    %v2011 = vpack.c.b16 %v1781, %v1780
    %v2012 = vpack.c.b16 %v1783, %v1782
    %v2013 = vpack.c.b16 %v1785, %v1784
    %v2014 = vpack.c.b16 %v1787, %v1786
    %v2015 = vpack.c.b16 %v1789, %v1788
    %v2016 = vpack.c.b16 %v1791, %v1790
    %v2017 = vpack.c.b16 %v1793, %v1792
    %v2018 = vpack.c.b16 %v1795, %v1794
    %v2019 = vpack.c.b16 %v1797, %v1796
    %v2020 = vpack.c.b16 %v1799, %v1798
    %v2021 = vpack.c.b16 %v1801, %v1800
    %v2022 = vpack.c.b16 %v1803, %v1802
    %v2023 = vpack.c.b16 %v1805, %v1804
    %v2024 = vpack.c.b16 %v1807, %v1806
    %v2025 = vpack.c.b16 %v1809, %v1808
    %v2026 = vpack.c.b16 %v1811, %v1810
    %v2027 = vpack.c.b16 %v1813, %v1812
    %v2028 = vpack.c.b16 %v1815, %v1814
    %v2029 = vpack.c.b16 %v1817, %v1816
    %v2030 = vpack.c.b16 %v1819, %v1818
    %v2031 = vpack.c.b16 %v1821, %v1820
    %v2032 = vpack.c.b16 %v1823, %v1822
    %v2033 = vpack.c.b16 %v1825, %v1824
    %v2034 = vpack.c.b16 %v1827, %v1826
    %v2035 = vpack.c.b16 %v1829, %v1828
    %v2036 = vpack.c.b16 %v1831, %v1830
    %v2037 = vpack.c.b16 %v1833, %v1832
    %v2038 = vpack.c.b16 %v1835, %v1834
    %v2039 = vpack.c.b16 %v1837, %v1836
    %v2040 = vpack.c.b16 %v1839, %v1838
    %v2041 = vpack.c.b16 %v1841, %v1840
    %v2042 = vpack.c.b16 %v1843, %v1842
    %v2043 = vpack.c.b16 %v1845, %v1844
    %v2044 = vpack.c.b16 %v1847, %v1846
    %v2045 = vpack.c.b16 %v1849, %v1848
    %v2046 = vpack.c.b16 %v1851, %v1850
    %v2047 = vpack.c.b16 %v1853, %v1852
    %v2048 = vpack.c.b16 %v1855, %v1854
    %v2049 = vpack.c.b16 %v1857, %v1856
    %v2050 = vpack.c.b16 %v1859, %v1858
    %v2051 = vpack.c.b16 %v1861, %v1860
    %v2052 = vpack.c.b16 %v1863, %v1862
    %v2053 = vpack.c.b16 %v1865, %v1864
    %v2054 = vpack.c.b16 %v1867, %v1866
    %v2055 = vpack.c.b16 %v1869, %v1868
    %v2056 = vpack.c.b16 %v1871, %v1870
    %v2057 = vpack.c.b16 %v1873, %v1872
    %v2058 = vpack.c.b16 %v1875, %v1874
    %v2059 = vpack.c.b16 %v1877, %v1876
    %v2060 = vpack.c.b16 %v1879, %v1878
    %v2061 = vpack.c.b16 %v1881, %v1880
    %v2062 = vpack.c.b16 %v1883, %v1882
    %v2063 = vpack.c.b16 %v1885, %v1884
    %v2064 = vpack.c.b16 %v1887, %v1886
    %v2065 = vpack.c.b16 %v1889, %v1888
    %v2066 = vpack.c.b16 %v1891, %v1890
    %v2067 = vpack.c.b16 %v1893, %v1892
    %v2068 = vpack.c.b16 %v1895, %v1894
    %v2069 = vpack.c.b16 %v1897, %v1896
    %v2070 = vpack.c.b16 %v1899, %v1898
    %v2071 = vpack.c.b16 %v1901, %v1900
    %v2072 = vpack.c.b16 %v1903, %v1902
    %v2073 = vpack.c.b16 %v1905, %v1904
    %v2074 = vpack.c.b16 %v1907, %v1906
    %v2075 = vpack.c.b16 %v1909, %v1908
    %v2076 = vpack.c.b16 %v1911, %v1910
    %v2077 = vpack.c.b16 %v1913, %v1912
    %v2078 = vpack.c.b16 %v1915, %v1914
    %v2079 = vpack.c.b16 %v1917, %v1916
    %v2080 = vpack.c.b16 %v1919, %v1918
    %v2081 = vpack.c.b16 %v1921, %v1920
    %v2082 = vpack.c.b16 %v1923, %v1922
    %v2083 = vpack.c.b16 %v1925, %v1924
    %v2084 = vpack.c.b16 %v1927, %v1926
    %v2085 = vpack.c.b16 %v1929, %v1928
    %v2086 = vpack.c.b16 %v1931, %v1930
    %v2087 = vpack.c.b16 %v1933, %v1932
    %v2088 = vpack.c.b16 %v1935, %v1934
    %v2089 = vpack.c.b16 %v1937, %v1936
    %v2090 = vpack.c.b16 %v1939, %v1938
    %v2091 = vpack.c.b16 %v1941, %v1940
    %v2092 = vpack.c.b16 %v1943, %v1942
    %v2093 = vpack.c.b16 %v1945, %v1944
    %v2094 = vpack.c.b16 %v1947, %v1946
    %v2095 = vpack.c.b16 %v1949, %v1948
    %v2096 = vpack.c.b16 %v1951, %v1950
    %v2097 = vpack.c.b16 %v1953, %v1952
    %v2098 = vpack.c.b16 %v1955, %v1954
    %v2099 = vpack.c.b16 %v1957, %v1956
    %v2100 = vpack.c.b16 %v1959, %v1958
    %v2101 = vpack.c.b16 %v1961, %v1960
    %v2102 = vpack.c.b16 %v1963, %v1962
    %v2103 = vpack.c.b16 %v1965, %v1964
    %v2104 = vpack.c.b16 %v1967, %v1966
    %v2105 = vpack.c.b16 %v1969, %v1968
    %v2106 = vpack.c.b16 %v1971, %v1970
    %v2107 = vpack.c.b16 %v1973, %v1972
    %v2108 = vpack.c.b16 %v1975, %v1974
    %v2109 = vpack.c.b16 %v1977, %v1976
    %v2110 = vpack.c.b16 %v1979, %v1978
    %v2111 = vpack.c.b16 %v1981, %v1980
    %v2112 = vpack.c.b16 %v1983, %v1982
    %v2113 = vpack.c.b16 %v1985, %v1984
    %2242 = vmatpush.bf16.msra.mxu0 %v1993
    %2243 = vmatpush.bf16.msra.mxu0 %v1992
    %2244 = vmatpush.bf16.msra.mxu0 %v1991
    %2245 = vmatpush.bf16.msra.mxu0 %v1990
    %2246 = vmatpush.bf16.msra.mxu0 %v1989
    %2247 = vmatpush.bf16.msra.mxu0 %v1988
    %2248 = vmatpush.bf16.msra.mxu0 %v1987
    %2249 = vmatpush.bf16.msra.mxu0 %v1986
    %2250 = vmatmul.bf16.gmra.mxu0 %v1198
    %v2251 = vpop.f32.mrf.mxu0
    %v2252 = vadd.f32 %v1472, %v2251
    %v2253 = vpop.f32.mrf.mxu0
    %2254 = vdwg.mxu0
    %2255 = vmatpush.bf16.msra.mxu0 %v2001
    %2256 = vmatpush.bf16.msra.mxu0 %v2000
    %2257 = vmatpush.bf16.msra.mxu0 %v1999
    %2258 = vmatpush.bf16.msra.mxu0 %v1998
    %2259 = vmatpush.bf16.msra.mxu0 %v1997
    %2260 = vmatpush.bf16.msra.mxu0 %v1996
    %2261 = vmatpush.bf16.msra.mxu0 %v1995
    %2262 = vmatpush.bf16.msra.mxu0 %v1994
    %2263 = vmatmul.bf16.gmra.mxu0 %v1199
    %v2264 = vpop.f32.mrf.mxu0
    %v2265 = vadd.f32 %v2252, %v2264
    %v2266 = vpop.f32.mrf.mxu0
    %2267 = vdwg.mxu0
    %2268 = vmatpush.bf16.msra.mxu0 %v2009
    %2269 = vmatpush.bf16.msra.mxu0 %v2008
    %2270 = vmatpush.bf16.msra.mxu0 %v2007
    %2271 = vmatpush.bf16.msra.mxu0 %v2006
    %2272 = vmatpush.bf16.msra.mxu0 %v2005
    %2273 = vmatpush.bf16.msra.mxu0 %v2004
    %2274 = vmatpush.bf16.msra.mxu0 %v2003
    %2275 = vmatpush.bf16.msra.mxu0 %v2002
    %2276 = vmatmul.bf16.gmra.mxu0 %v1200
    %v2277 = vpop.f32.mrf.mxu0
    %v2278 = vadd.f32 %v2265, %v2277
    %v2279 = vpop.f32.mrf.mxu0
    %2280 = vdwg.mxu0
    %2281 = vmatpush.bf16.msra.mxu0 %v2017
    %2282 = vmatpush.bf16.msra.mxu0 %v2016
    %2283 = vmatpush.bf16.msra.mxu0 %v2015
    %2284 = vmatpush.bf16.msra.mxu0 %v2014
    %2285 = vmatpush.bf16.msra.mxu0 %v2013
    %2286 = vmatpush.bf16.msra.mxu0 %v2012
    %2287 = vmatpush.bf16.msra.mxu0 %v2011
    %2288 = vmatpush.bf16.msra.mxu0 %v2010
    %2289 = vmatmul.bf16.gmra.mxu0 %v1201
    %v2290 = vpop.f32.mrf.mxu0
    %v2291 = vadd.f32 %v2278, %v2290
    %v2292 = vpop.f32.mrf.mxu0
    %2293 = vdwg.mxu0
    %2294 = vmatpush.bf16.msra.mxu0 %v2025
    %2295 = vmatpush.bf16.msra.mxu0 %v2024
    %2296 = vmatpush.bf16.msra.mxu0 %v2023
    %2297 = vmatpush.bf16.msra.mxu0 %v2022
    %2298 = vmatpush.bf16.msra.mxu0 %v2021
    %2299 = vmatpush.bf16.msra.mxu0 %v2020
    %2300 = vmatpush.bf16.msra.mxu0 %v2019
    %2301 = vmatpush.bf16.msra.mxu0 %v2018
    %2302 = vmatmul.bf16.gmra.mxu0 %v1202
    %v2303 = vpop.f32.mrf.mxu0
    %v2304 = vadd.f32 %v2291, %v2303
    %v2305 = vpop.f32.mrf.mxu0
    %2306 = vdwg.mxu0
    %2307 = vmatpush.bf16.msra.mxu0 %v2033
    %2308 = vmatpush.bf16.msra.mxu0 %v2032
    %2309 = vmatpush.bf16.msra.mxu0 %v2031
    %2310 = vmatpush.bf16.msra.mxu0 %v2030
    %2311 = vmatpush.bf16.msra.mxu0 %v2029
    %2312 = vmatpush.bf16.msra.mxu0 %v2028
    %2313 = vmatpush.bf16.msra.mxu0 %v2027
    %2314 = vmatpush.bf16.msra.mxu0 %v2026
    %2315 = vmatmul.bf16.gmra.mxu0 %v1203
    %v2316 = vpop.f32.mrf.mxu0
    %v2317 = vadd.f32 %v2304, %v2316
    %v2318 = vpop.f32.mrf.mxu0
    %2319 = vdwg.mxu0
    %2320 = vmatpush.bf16.msra.mxu0 %v2041
    %2321 = vmatpush.bf16.msra.mxu0 %v2040
    %2322 = vmatpush.bf16.msra.mxu0 %v2039
    %2323 = vmatpush.bf16.msra.mxu0 %v2038
    %2324 = vmatpush.bf16.msra.mxu0 %v2037
    %2325 = vmatpush.bf16.msra.mxu0 %v2036
    %2326 = vmatpush.bf16.msra.mxu0 %v2035
    %2327 = vmatpush.bf16.msra.mxu0 %v2034
    %2328 = vmatmul.bf16.gmra.mxu0 %v1204
    %v2329 = vpop.f32.mrf.mxu0
    %v2330 = vadd.f32 %v2317, %v2329
    %v2331 = vpop.f32.mrf.mxu0
    %2332 = vdwg.mxu0
    %2333 = vmatpush.bf16.msra.mxu0 %v2049
    %2334 = vmatpush.bf16.msra.mxu0 %v2048
    %2335 = vmatpush.bf16.msra.mxu0 %v2047
    %2336 = vmatpush.bf16.msra.mxu0 %v2046
    %2337 = vmatpush.bf16.msra.mxu0 %v2045
    %2338 = vmatpush.bf16.msra.mxu0 %v2044
    %2339 = vmatpush.bf16.msra.mxu0 %v2043
    %2340 = vmatpush.bf16.msra.mxu0 %v2042
    %2341 = vmatmul.bf16.gmra.mxu0 %v1205
    %v2342 = vpop.f32.mrf.mxu0
    %v2343 = vadd.f32 %v2330, %v2342
    %v2344 = vpop.f32.mrf.mxu0
    %2345 = vdwg.mxu0
    %2346 = vmatpush.bf16.msra.mxu0 %v2057
    %2347 = vmatpush.bf16.msra.mxu0 %v2056
    %2348 = vmatpush.bf16.msra.mxu0 %v2055
    %2349 = vmatpush.bf16.msra.mxu0 %v2054
    %2350 = vmatpush.bf16.msra.mxu0 %v2053
    %2351 = vmatpush.bf16.msra.mxu0 %v2052
    %2352 = vmatpush.bf16.msra.mxu0 %v2051
    %2353 = vmatpush.bf16.msra.mxu0 %v2050
    %2354 = vmatmul.bf16.gmra.mxu0 %v1206
    %v2355 = vpop.f32.mrf.mxu0
    %v2356 = vadd.f32 %v2343, %v2355
    %v2357 = vpop.f32.mrf.mxu0
    %2358 = vdwg.mxu0
    %2359 = vmatpush.bf16.msra.mxu0 %v2065
    %2360 = vmatpush.bf16.msra.mxu0 %v2064
    %2361 = vmatpush.bf16.msra.mxu0 %v2063
    %2362 = vmatpush.bf16.msra.mxu0 %v2062
    %2363 = vmatpush.bf16.msra.mxu0 %v2061
    %2364 = vmatpush.bf16.msra.mxu0 %v2060
    %2365 = vmatpush.bf16.msra.mxu0 %v2059
    %2366 = vmatpush.bf16.msra.mxu0 %v2058
    %2367 = vmatmul.bf16.gmra.mxu0 %v1207
    %v2368 = vpop.f32.mrf.mxu0
    %v2369 = vadd.f32 %v2356, %v2368
    %v2370 = vpop.f32.mrf.mxu0
    %2371 = vdwg.mxu0
    %2372 = vmatpush.bf16.msra.mxu0 %v2073
    %2373 = vmatpush.bf16.msra.mxu0 %v2072
    %2374 = vmatpush.bf16.msra.mxu0 %v2071
    %2375 = vmatpush.bf16.msra.mxu0 %v2070
    %2376 = vmatpush.bf16.msra.mxu0 %v2069
    %2377 = vmatpush.bf16.msra.mxu0 %v2068
    %2378 = vmatpush.bf16.msra.mxu0 %v2067
    %2379 = vmatpush.bf16.msra.mxu0 %v2066
    %2380 = vmatmul.bf16.gmra.mxu0 %v1208
    %v2381 = vpop.f32.mrf.mxu0
    %v2382 = vadd.f32 %v2369, %v2381
    %v2383 = vpop.f32.mrf.mxu0
    %2384 = vdwg.mxu0
    %2385 = vmatpush.bf16.msra.mxu0 %v2081
    %2386 = vmatpush.bf16.msra.mxu0 %v2080
    %2387 = vmatpush.bf16.msra.mxu0 %v2079
    %2388 = vmatpush.bf16.msra.mxu0 %v2078
    %2389 = vmatpush.bf16.msra.mxu0 %v2077
    %2390 = vmatpush.bf16.msra.mxu0 %v2076
    %2391 = vmatpush.bf16.msra.mxu0 %v2075
    %2392 = vmatpush.bf16.msra.mxu0 %v2074
    %2393 = vmatmul.bf16.gmra.mxu0 %v1209
    %v2394 = vpop.f32.mrf.mxu0
    %v2395 = vadd.f32 %v2382, %v2394
    %v2396 = vpop.f32.mrf.mxu0
    %2397 = vdwg.mxu0
    %2398 = vmatpush.bf16.msra.mxu0 %v2089
    %2399 = vmatpush.bf16.msra.mxu0 %v2088
    %2400 = vmatpush.bf16.msra.mxu0 %v2087
    %2401 = vmatpush.bf16.msra.mxu0 %v2086
    %2402 = vmatpush.bf16.msra.mxu0 %v2085
    %2403 = vmatpush.bf16.msra.mxu0 %v2084
    %2404 = vmatpush.bf16.msra.mxu0 %v2083
    %2405 = vmatpush.bf16.msra.mxu0 %v2082
    %2406 = vmatmul.bf16.gmra.mxu0 %v1210
    %v2407 = vpop.f32.mrf.mxu0
    %v2408 = vadd.f32 %v2395, %v2407
    %v2409 = vpop.f32.mrf.mxu0
    %2410 = vdwg.mxu0
    %2411 = vmatpush.bf16.msra.mxu0 %v2097
    %2412 = vmatpush.bf16.msra.mxu0 %v2096
    %2413 = vmatpush.bf16.msra.mxu0 %v2095
    %2414 = vmatpush.bf16.msra.mxu0 %v2094
    %2415 = vmatpush.bf16.msra.mxu0 %v2093
    %2416 = vmatpush.bf16.msra.mxu0 %v2092
    %2417 = vmatpush.bf16.msra.mxu0 %v2091
    %2418 = vmatpush.bf16.msra.mxu0 %v2090
    %2419 = vmatmul.bf16.gmra.mxu0 %v1211
    %v2420 = vpop.f32.mrf.mxu0
    %v2421 = vadd.f32 %v2408, %v2420
    %v2422 = vpop.f32.mrf.mxu0
    %2423 = vdwg.mxu0
    %2424 = vmatpush.bf16.msra.mxu0 %v2105
    %2425 = vmatpush.bf16.msra.mxu0 %v2104
    %2426 = vmatpush.bf16.msra.mxu0 %v2103
    %2427 = vmatpush.bf16.msra.mxu0 %v2102
    %2428 = vmatpush.bf16.msra.mxu0 %v2101
    %2429 = vmatpush.bf16.msra.mxu0 %v2100
    %2430 = vmatpush.bf16.msra.mxu0 %v2099
    %2431 = vmatpush.bf16.msra.mxu0 %v2098
    %2432 = vmatmul.bf16.gmra.mxu0 %v1212
    %v2433 = vpop.f32.mrf.mxu0
    %v2434 = vadd.f32 %v2421, %v2433
    %v2435 = vpop.f32.mrf.mxu0
    %2436 = vdwg.mxu0
    %2437 = vmatpush.bf16.msra.mxu0 %v2113
    %2438 = vmatpush.bf16.msra.mxu0 %v2112
    %2439 = vmatpush.bf16.msra.mxu0 %v2111
    %2440 = vmatpush.bf16.msra.mxu0 %v2110
    %2441 = vmatpush.bf16.msra.mxu0 %v2109
    %2442 = vmatpush.bf16.msra.mxu0 %v2108
    %2443 = vmatpush.bf16.msra.mxu0 %v2107
    %2444 = vmatpush.bf16.msra.mxu0 %v2106
    %2445 = vmatmul.bf16.gmra.mxu0 %v1213
    %v2446 = vpop.f32.mrf.mxu0
    %v2447 = vadd.f32 %v2434, %v2446
    %v2448 = vpop.f32.mrf.mxu0
    %2449 = vdwg.mxu0
    %v2450 = vadd.f32 %v627, %v2447
    %v2451 = vsel %vm184, %v2450, 0.0
    %2452 = vadd.xlane.f32.xlu0 %v2451
    %v2453 = vpop.xlane.xlu0 %2452
    %v2454 = vmul.f32 %v2453, %v598
    %v2455 = vsub.f32 %v2450, %v2454
    %v2456 = vmul.f32 %v2455, %v2455
    %v2457 = vsel %vm184, %v2456, 0.0
    %2458 = vadd.xlane.f32.xlu0 %v2457
    %v2459 = vpop.xlane.xlu0 %2458
    %v2460 = vmul.f32 %v2459, %v598
    %v2461 = vadd.f32 %v2460, 1e-05
    %v2462 = vrsqrt.pop %v2461
    %v2463 = vmul.f32 %v2462, %v2461
    %v2464 = vmul.f32 %v2463, %v2462
    %v2465 = vmul.f32 0.5, %v2464
    %v2466 = vsub.f32 1.5, %v2465
    %v2467 = vmul.f32 %v2462, %v2466
    %vm2468 = vweird.f32 %v2461
    %vm2469 = vweird.f32 %v2462
    %vm2470 = vmor %vm2468, %vm2469
    %v2471 = vsel %vm2470, %v2462, %v2467
    %v2472 = vmul.f32 %v2455, %v2471
    %v2473 = vld [vmem:[%s18] sm:$0x1]
    %v2475 = vperm.slane %v2473, 0
    %v2477 = vmul.f32 %v2472, %v2475
    %v2478 = vld [vmem:[%s19] sm:$0x1]
    %v2480 = vperm.slane %v2478, 0
    %v2482 = vadd.f32 %v2477, %v2480
    %v2483 = vld [vmem:[%s20] sm:$0x1]
    %v2484 = vld [vmem:[#allocation4] sm:$0x1]
    %2486 = vset.pattern.permute.xlu0 0
    %2487 = vperm.xlu0 %2486, %v2484
    %v2488 = vpop.permute.xlu0 %2487
    %v2490 = vperm.slane %v2488, 0
    %v2492 = vsel %vm184, %v2483, 0
    %v2495 = vsel %vm184, %v2482, 0
    %2497 = vmatpush.xpose.msra.mxu0 0.0
    %2498 = vmatpush.xpose.msra.mxu0 0.0
    %2499 = vmatpush.xpose.msra.mxu0 0.0
    %2500 = vmatpush.xpose.msra.mxu0 0.0
    %2501 = vmatpush.xpose.msra.mxu0 0.0
    %2502 = vmatpush.xpose.msra.mxu0 0.0
    %2503 = vmatpush.xpose.msra.mxu0 0.0
    %2504 = vmatpush.xpose.msra.mxu0 0.0
    %2505 = vmatpush.xpose.msra.mxu0 0.0
    %2506 = vmatpush.xpose.msra.mxu0 0.0
    %2507 = vmatpush.xpose.msra.mxu0 0.0
    %2508 = vmatpush.xpose.msra.mxu0 0.0
    %2509 = vmatpush.xpose.msra.mxu0 0.0
    %2510 = vmatpush.xpose.msra.mxu0 0.0
    %2511 = vmatpush.xpose.msra.mxu0 0.0
    %2512 = vmatpush.xpose.msra.mxu0 %v2495
    %2513 = vmatmul.f32.gmra.mxu0 %v2492
    %v2514 = vpop.f32.mrf.mxu0
    %v2515 = vadd.f32 %v2490, %v2514
    %2516 = vdwg.mxu0
    %vm2517 = vcmask 57344
    %2518 = vst.msk [vmem:[#allocation5] sm:$0x1] %vm2517, %v2515
    // Predicated region
    $region90: #{tpu_custom_call.1} parent=1 // pred_check
      _
    $region91: #{tpu_custom_call.1} parent=1 // pred_check_branch
      %2520 = sbr.rel (0) target = $region93
    $region92: #{tpu_custom_call.1} parent=1 // pred_region
      %2522 = vsyncadd [#allocation6], 0
      %s2524 = sshll.u32 [#allocation5], 4
      %s2525 = int_to_ptr.vmem [resolvable:$true] %s2524
      %s2526 = sshll.u32 %s22, 4
      %s2527 = int_to_ptr.hbm [resolvable:$true] %s2526
      %2529 = dma.vmem_to_hbm [thread:$0]  %s2525, 16, %s2527, [#allocation6]
    $region93: #{tpu_custom_call.1} parent=1 // pred_fallthru
      _
    // Predicated region
    $region94: #{tpu_custom_call.1} parent=1 // pred_check
      _
    $region95: #{tpu_custom_call.1} parent=1 // pred_check_branch
      %2531 = sbr.rel (0) target = $region97
    $region96: #{tpu_custom_call.1} parent=1 // pred_region
      %2533 = dma.done [#allocation6], 16
    $region97: #{tpu_custom_call.1} parent=1 // pred_fallthru
      _
    %2534 = vsyncpa [#allocation6], 1

</llo_original>
